<compile_context>
chip_gen: v6e
topology: v6e:2x2x1
jax: 0.10.0
libtpu: 0.0.40
codegen_flags: <defaults>
</compile_context>

<pallas_src>
import jax
import jax.numpy as jnp
from jax.experimental import pallas as pl
from jax.experimental.pallas import tpu as pltpu


def _round_up(x, m):
    return ((x + m - 1) // m) * m


# ----------------------------- Fused Pallas kernel ---------------------------

def _make_fused_kernel(n_support, ns_pad, d_pad, nway_pad):
    """Fused kernel: backbone -> prototypes -> -cdist, one episode per call."""

    def kernel(labels_ref, x_ref, w_ref, b_ref, scores_ref):
        # ---- Backbone: z = relu(x @ W + b), support + query in ONE matmul.
        # TODO(synk): at realistic F/N, cast x/W to bf16 (keep f32 accumulate),
        # tile the F axis with an "arbitrary" grid dim, and set
        # vmem_limit_bytes explicitly (v7x VMEM is only 64 MiB).
        z_all = jnp.maximum(
            jnp.dot(x_ref[...], w_ref[...],
                    preferred_element_type=jnp.float32) + b_ref[...],
            0.0)                                        # (ns_pad+nq_pad, d_pad)
        z_support = z_all[:ns_pad, :]                   # (ns_pad, d_pad)
        z_query = z_all[ns_pad:, :]                     # (nq_pad, d_pad)

        # ---- Prototypes: per-class mean via one-hot matmul (MXU).
        # onehot[c, s] = 1 iff support_labels[s] == c; built from SMEM scalars.
        # Padded support columns / padded class rows stay all-zero.
        cls_iota = jax.lax.broadcasted_iota(jnp.int32, (nway_pad, ns_pad), 0)
        col_iota = jax.lax.broadcasted_iota(jnp.int32, (nway_pad, ns_pad), 1)
        onehot = jnp.zeros((nway_pad, ns_pad), jnp.float32)
        for s in range(n_support):                      # static, tiny, unrolled
            lbl = labels_ref[s]                         # SMEM scalar read
            onehot = onehot + jnp.where(
                (col_iota == s) & (cls_iota == lbl), 1.0, 0.0)
        counts = jnp.sum(onehot, axis=1, keepdims=True)           # (nway_pad, 1)
        # Guard empty classes (PyTorch's mean over an empty set would NaN).
        inv_counts = jnp.where(counts > 0.0,
                               1.0 / jnp.maximum(counts, 1.0), 0.0)
        z_proto = jnp.dot(onehot * inv_counts, z_support,
                          preferred_element_type=jnp.float32)     # (nway_pad, d_pad)

        # ---- Scores: -cdist(q, p) in MXU form  d2 = |q|^2 + |p|^2 - 2 q.p^T.
        qp = jax.lax.dot_general(
            z_query, z_proto, (((1,), (1,)), ((), ())),
            preferred_element_type=jnp.float32)                   # (nq_pad, nway_pad)
        q2 = jnp.sum(z_query * z_query, axis=-1, keepdims=True)   # (nq_pad, 1)
        p2 = jax.lax.dot_general(
            jnp.ones((1, d_pad), jnp.float32), z_proto * z_proto,
            (((1,), (1,)), ((), ())),
            preferred_element_type=jnp.float32)                   # (1, nway_pad)
        d2 = jnp.maximum(q2 + p2 - 2.0 * qp, 0.0)
        scores_ref[...] = -jnp.sqrt(d2)                 # lane-dense (8,128) store

    return kernel


# --------------------------------- Wrapper -----------------------------------

def prototypical_networks_forward(support_images, support_labels, query_images,
                                  w, b, n_way):
    """Mirrors PrototypicalNetworks.forward; returns scores (Nq, n_way).

    TODO(synk): n_way = len(torch.unique(support_labels)) is data-dependent in
    PyTorch; under JAX it must be static (labels assumed to be 0..n_way-1).
    """
    ns = support_images.shape[0]
    nq = query_images.shape[0]
    f, d = w.shape

    ns_pad = _round_up(ns, 8)
    nq_pad = _round_up(nq, 8)
    d_pad = _round_up(d, 128)          # zero columns -> distances unchanged
    nway_pad = _round_up(n_way, 128)   # lane-dense scores store

    # Lightweight flatten / zero-pad glue (plain JAX, once per call).
    x_s = support_images.reshape(ns, -1).astype(jnp.float32)
    x_q = query_images.reshape(nq, -1).astype(jnp.float32)
    x_all = jnp.concatenate(
        [jnp.pad(x_s, ((0, ns_pad - ns), (0, 0))),
         jnp.pad(x_q, ((0, nq_pad - nq), (0, 0)))], axis=0)  # (ns_pad+nq_pad, F)
    w_p = jnp.pad(w.astype(jnp.float32), ((0, 0), (0, d_pad - d)))
    b_p = jnp.pad(b.astype(jnp.float32).reshape(1, d), ((0, 0), (0, d_pad - d)))
    labels = support_labels.astype(jnp.int32)

    n_rows = ns_pad + nq_pad
    kernel = _make_fused_kernel(ns, ns_pad, d_pad, nway_pad)

    grid_spec = pltpu.PrefetchScalarGridSpec(
        num_scalar_prefetch=1,          # support_labels -> SMEM
        grid=(1,),
        in_specs=[
            pl.BlockSpec((n_rows, f), lambda i, lbl: (0, 0)),
            pl.BlockSpec((f, d_pad), lambda i, lbl: (0, 0)),
            pl.BlockSpec((1, d_pad), lambda i, lbl: (0, 0)),
        ],
        out_specs=pl.BlockSpec((nq_pad, nway_pad), lambda i, lbl: (0, 0)),
    )
    scores_pad = pl.pallas_call(
        kernel,
        grid_spec=grid_spec,
        out_shape=jax.ShapeDtypeStruct((nq_pad, nway_pad), jnp.float32),
        compiler_params=pltpu.CompilerParams(
            dimension_semantics=("arbitrary",)),
    )(labels, x_all, w_p, b_p)

    return scores_pad[:nq, :n_way]


# ------------------------- Pure-JAX reference (check) ------------------------

def _reference_forward(support_images, support_labels, query_images, w, b, n_way):
    ns = support_images.shape[0]
    nq = query_images.shape[0]
    x_s = support_images.reshape(ns, -1).astype(jnp.float32)
    x_q = query_images.reshape(nq, -1).astype(jnp.float32)
    z_s = jnp.maximum(x_s @ w + b, 0.0)
    z_q = jnp.maximum(x_q @ w + b, 0.0)
    onehot = (support_labels[None, :] == jnp.arange(n_way)[:, None]).astype(jnp.float32)
    protos = (onehot @ z_s) / jnp.sum(onehot, axis=1, keepdims=True)
    diff = z_q[:, None, :] - protos[None, :, :]
    return -jnp.sqrt(jnp.maximum(jnp.sum(diff * diff, axis=-1), 0.0))


# ----------------------------------- Main ------------------------------------

if __name__ == "__main__":
    key = jax.random.PRNGKey(0)
    k_s, k_q, k_w, k_b = jax.random.split(key, 4)

    # Small few-shot episode: 2-way, 3-shot, 4 queries; images (N, 4, 16, 16).
    n_way, n_shot, n_query = 2, 3, 4
    C, H, W = 4, 16, 16
    D = 32                     # embedding dim (zero-padded to 128 in-kernel)
    F = C * H * W              # flattened feature size = 1024

    support_images = jax.random.normal(k_s, (n_way * n_shot, C, H, W), jnp.float32)
    query_images = jax.random.normal(k_q, (n_query, C, H, W), jnp.float32)
    support_labels = jnp.array([0, 1, 0, 1, 0, 1], dtype=jnp.int32)

    # Deterministic synthetic backbone parameters (Linear F -> D).
    w_back = jax.random.normal(k_w, (F, D), jnp.float32) * (1.0 / jnp.sqrt(F))
    b_back = jax.random.normal(k_b, (1, D), jnp.float32) * 0.01

    scores = prototypical_networks_forward(
        support_images, support_labels, query_images, w_back, b_back, n_way)
    scores = jax.block_until_ready(scores)

    assert scores.shape == (n_query, n_way)
    assert scores.dtype == jnp.float32

    ref = _reference_forward(
        support_images, support_labels, query_images, w_back, b_back, n_way)
    max_err = float(jnp.max(jnp.abs(scores - ref)))
    # Loose tolerance: MXU f32 path vs XLA reference matmul precision differ.
    assert max_err < 1e-1, f"max abs error {max_err}"

    print("KERNEL_OK")
</pallas_src>

<mosaic_0001>
module attributes {stable_mosaic.version = 11 : i64} {
  func.func @kernel(%arg0: i32, %arg1: memref<6xi32, #tpu.memory_space<smem>>, %arg2: memref<16x1024xf32, #tpu.memory_space<vmem>>, %arg3: memref<1024x128xf32, #tpu.memory_space<vmem>>, %arg4: memref<1x128xf32, #tpu.memory_space<vmem>>, %arg5: memref<8x128xf32, #tpu.memory_space<vmem>>) attributes {dimension_semantics = [#tpu.dimension_semantics<arbitrary>], iteration_bounds = array<i64: 1>, scalar_prefetch = 1 : i64, scratch_operands = 0 : i64, tpu.core_type = #tpu.core_type<tc>, window_params = [{pipeline_mode = #tpu.pipeline_mode<synchronous>, transform_indices = @transform_0, window_bounds = array<i64: 16, 1024>}, {pipeline_mode = #tpu.pipeline_mode<synchronous>, transform_indices = @transform_1, window_bounds = array<i64: 1024, 128>}, {pipeline_mode = #tpu.pipeline_mode<synchronous>, transform_indices = @transform_2, window_bounds = array<i64: 1, 128>}, {pipeline_mode = #tpu.pipeline_mode<synchronous>, transform_indices = @transform_3, window_bounds = array<i64: 8, 128>}]} {
    %c0 = arith.constant 0 : index
    %c0_0 = arith.constant 0 : index
    %0 = vector.load %arg2[%c0, %c0_0] : memref<16x1024xf32, #tpu.memory_space<vmem>>, vector<16x1024xf32>
    %c0_1 = arith.constant 0 : index
    %c0_2 = arith.constant 0 : index
    %1 = vector.load %arg3[%c0_1, %c0_2] : memref<1024x128xf32, #tpu.memory_space<vmem>>, vector<1024x128xf32>
    %cst = arith.constant dense<0.000000e+00> : vector<16x128xf32>
    %2 = tpu.matmul %0, %1, %cst {dimension_numbers = #tpu.dot_dimension_numbers<[1], [0], [0], [1], [0, 0, 1, 1], [], []>} : vector<16x1024xf32>, vector<1024x128xf32>, vector<16x128xf32> -> vector<16x128xf32>
    %c0_3 = arith.constant 0 : index
    %c0_4 = arith.constant 0 : index
    %3 = vector.load %arg4[%c0_3, %c0_4] : memref<1x128xf32, #tpu.memory_space<vmem>>, vector<1x128xf32>
    %4 = vector.broadcast %3 : vector<1x128xf32> to vector<16x128xf32>
    %5 = arith.addf %2, %4 : vector<16x128xf32>
    %cst_5 = arith.constant 0.000000e+00 : f32
    %6 = vector.broadcast %cst_5 : f32 to vector<16x128xf32>
    %7 = arith.maximumf %5, %6 : vector<16x128xf32>
    %8 = vector.extract_strided_slice %7 {offsets = [0, 0], sizes = [8, 128], strides = [1, 1]} : vector<16x128xf32> to vector<8x128xf32>
    %9 = vector.extract_strided_slice %7 {offsets = [8, 0], sizes = [8, 128], strides = [1, 1]} : vector<16x128xf32> to vector<8x128xf32>
    %10 = tpu.iota {dimensions = array<i32: 0>} : vector<128x8xi32>
    %11 = tpu.iota {dimensions = array<i32: 1>} : vector<128x8xi32>
    %cst_6 = arith.constant 0.000000e+00 : f32
    %12 = vector.broadcast %cst_6 : f32 to vector<128x8xf32>
    %c0_7 = arith.constant 0 : index
    %13 = memref.load %arg1[%c0_7] : memref<6xi32, #tpu.memory_space<smem>>
    %c0_i32 = arith.constant 0 : i32
    %14 = vector.broadcast %c0_i32 : i32 to vector<128x8xi32>
    %15 = arith.cmpi eq, %11, %14 : vector<128x8xi32>
    %16 = vector.broadcast %13 : i32 to vector<128x8xi32>
    %17 = arith.cmpi eq, %10, %16 : vector<128x8xi32>
    %18 = arith.andi %15, %17 : vector<128x8xi1>
    %cst_8 = arith.constant 1.000000e+00 : f32
    %cst_9 = arith.constant 0.000000e+00 : f32
    %19 = vector.broadcast %cst_8 : f32 to vector<128x8xf32>
    %20 = vector.broadcast %cst_9 : f32 to vector<128x8xf32>
    %21 = arith.select %18, %19, %20 : vector<128x8xi1>, vector<128x8xf32>
    %22 = arith.addf %12, %21 : vector<128x8xf32>
    %c1 = arith.constant 1 : index
    %23 = memref.load %arg1[%c1] : memref<6xi32, #tpu.memory_space<smem>>
    %c1_i32 = arith.constant 1 : i32
    %24 = vector.broadcast %c1_i32 : i32 to vector<128x8xi32>
    %25 = arith.cmpi eq, %11, %24 : vector<128x8xi32>
    %26 = vector.broadcast %23 : i32 to vector<128x8xi32>
    %27 = arith.cmpi eq, %10, %26 : vector<128x8xi32>
    %28 = arith.andi %25, %27 : vector<128x8xi1>
    %cst_10 = arith.constant 1.000000e+00 : f32
    %cst_11 = arith.constant 0.000000e+00 : f32
    %29 = vector.broadcast %cst_10 : f32 to vector<128x8xf32>
    %30 = vector.broadcast %cst_11 : f32 to vector<128x8xf32>
    %31 = arith.select %28, %29, %30 : vector<128x8xi1>, vector<128x8xf32>
    %32 = arith.addf %22, %31 : vector<128x8xf32>
    %c2 = arith.constant 2 : index
    %33 = memref.load %arg1[%c2] : memref<6xi32, #tpu.memory_space<smem>>
    %c2_i32 = arith.constant 2 : i32
    %34 = vector.broadcast %c2_i32 : i32 to vector<128x8xi32>
    %35 = arith.cmpi eq, %11, %34 : vector<128x8xi32>
    %36 = vector.broadcast %33 : i32 to vector<128x8xi32>
    %37 = arith.cmpi eq, %10, %36 : vector<128x8xi32>
    %38 = arith.andi %35, %37 : vector<128x8xi1>
    %cst_12 = arith.constant 1.000000e+00 : f32
    %cst_13 = arith.constant 0.000000e+00 : f32
    %39 = vector.broadcast %cst_12 : f32 to vector<128x8xf32>
    %40 = vector.broadcast %cst_13 : f32 to vector<128x8xf32>
    %41 = arith.select %38, %39, %40 : vector<128x8xi1>, vector<128x8xf32>
    %42 = arith.addf %32, %41 : vector<128x8xf32>
    %c3 = arith.constant 3 : index
    %43 = memref.load %arg1[%c3] : memref<6xi32, #tpu.memory_space<smem>>
    %c3_i32 = arith.constant 3 : i32
    %44 = vector.broadcast %c3_i32 : i32 to vector<128x8xi32>
    %45 = arith.cmpi eq, %11, %44 : vector<128x8xi32>
    %46 = vector.broadcast %43 : i32 to vector<128x8xi32>
    %47 = arith.cmpi eq, %10, %46 : vector<128x8xi32>
    %48 = arith.andi %45, %47 : vector<128x8xi1>
    %cst_14 = arith.constant 1.000000e+00 : f32
    %cst_15 = arith.constant 0.000000e+00 : f32
    %49 = vector.broadcast %cst_14 : f32 to vector<128x8xf32>
    %50 = vector.broadcast %cst_15 : f32 to vector<128x8xf32>
    %51 = arith.select %48, %49, %50 : vector<128x8xi1>, vector<128x8xf32>
    %52 = arith.addf %42, %51 : vector<128x8xf32>
    %c4 = arith.constant 4 : index
    %53 = memref.load %arg1[%c4] : memref<6xi32, #tpu.memory_space<smem>>
    %c4_i32 = arith.constant 4 : i32
    %54 = vector.broadcast %c4_i32 : i32 to vector<128x8xi32>
    %55 = arith.cmpi eq, %11, %54 : vector<128x8xi32>
    %56 = vector.broadcast %53 : i32 to vector<128x8xi32>
    %57 = arith.cmpi eq, %10, %56 : vector<128x8xi32>
    %58 = arith.andi %55, %57 : vector<128x8xi1>
    %cst_16 = arith.constant 1.000000e+00 : f32
    %cst_17 = arith.constant 0.000000e+00 : f32
    %59 = vector.broadcast %cst_16 : f32 to vector<128x8xf32>
    %60 = vector.broadcast %cst_17 : f32 to vector<128x8xf32>
    %61 = arith.select %58, %59, %60 : vector<128x8xi1>, vector<128x8xf32>
    %62 = arith.addf %52, %61 : vector<128x8xf32>
    %c5 = arith.constant 5 : index
    %63 = memref.load %arg1[%c5] : memref<6xi32, #tpu.memory_space<smem>>
    %c5_i32 = arith.constant 5 : i32
    %64 = vector.broadcast %c5_i32 : i32 to vector<128x8xi32>
    %65 = arith.cmpi eq, %11, %64 : vector<128x8xi32>
    %66 = vector.broadcast %63 : i32 to vector<128x8xi32>
    %67 = arith.cmpi eq, %10, %66 : vector<128x8xi32>
    %68 = arith.andi %65, %67 : vector<128x8xi1>
    %cst_18 = arith.constant 1.000000e+00 : f32
    %cst_19 = arith.constant 0.000000e+00 : f32
    %69 = vector.broadcast %cst_18 : f32 to vector<128x8xf32>
    %70 = vector.broadcast %cst_19 : f32 to vector<128x8xf32>
    %71 = arith.select %68, %69, %70 : vector<128x8xi1>, vector<128x8xf32>
    %72 = arith.addf %62, %71 : vector<128x8xf32>
    %cst_20 = arith.constant dense<0.000000e+00> : vector<128xf32>
    %73 = vector.multi_reduction <add>, %72, %cst_20 [1] : vector<128x8xf32> to vector<128xf32>
    %74 = vector.shape_cast %73 : vector<128xf32> to vector<128x1xf32>
    %cst_21 = arith.constant 0.000000e+00 : f32
    %75 = vector.broadcast %cst_21 : f32 to vector<128x1xf32>
    %76 = arith.cmpf ogt, %74, %75 : vector<128x1xf32>
    %cst_22 = arith.constant 1.000000e+00 : f32
    %77 = vector.broadcast %cst_22 : f32 to vector<128x1xf32>
    %78 = arith.maximumf %74, %77 : vector<128x1xf32>
    %cst_23 = arith.constant 1.000000e+00 : f32
    %79 = vector.broadcast %cst_23 : f32 to vector<128x1xf32>
    %80 = arith.divf %79, %78 : vector<128x1xf32>
    %cst_24 = arith.constant 0.000000e+00 : f32
    %81 = vector.broadcast %cst_24 : f32 to vector<128x1xf32>
    %82 = arith.select %76, %80, %81 : vector<128x1xi1>, vector<128x1xf32>
    %83 = vector.broadcast %82 : vector<128x1xf32> to vector<128x8xf32>
    %84 = arith.mulf %72, %83 : vector<128x8xf32>
    %cst_25 = arith.constant dense<0.000000e+00> : vector<128x128xf32>
    %85 = tpu.matmul %84, %8, %cst_25 {dimension_numbers = #tpu.dot_dimension_numbers<[1], [0], [0], [1], [0, 0, 1, 1], [], []>} : vector<128x8xf32>, vector<8x128xf32>, vector<128x128xf32> -> vector<128x128xf32>
    %cst_26 = arith.constant dense<0.000000e+00> : vector<8x128xf32>
    %86 = tpu.matmul %9, %85, %cst_26 {dimension_numbers = #tpu.dot_dimension_numbers<[1], [1], [0], [0], [0, 0, 1, 0], [], []>} : vector<8x128xf32>, vector<128x128xf32>, vector<8x128xf32> -> vector<8x128xf32>
    %87 = arith.mulf %9, %9 : vector<8x128xf32>
    %cst_27 = arith.constant dense<0.000000e+00> : vector<8xf32>
    %88 = vector.multi_reduction <add>, %87, %cst_27 [1] : vector<8x128xf32> to vector<8xf32>
    %89 = vector.shape_cast %88 : vector<8xf32> to vector<8x1xf32>
    %cst_28 = arith.constant 1.000000e+00 : f32
    %90 = vector.broadcast %cst_28 : f32 to vector<1x128xf32>
    %91 = arith.mulf %85, %85 : vector<128x128xf32>
    %cst_29 = arith.constant dense<0.000000e+00> : vector<1x128xf32>
    %92 = tpu.matmul %90, %91, %cst_29 {dimension_numbers = #tpu.dot_dimension_numbers<[1], [1], [0], [0], [0, 0, 1, 0], [], []>} : vector<1x128xf32>, vector<128x128xf32>, vector<1x128xf32> -> vector<1x128xf32>
    %93 = vector.broadcast %89 : vector<8x1xf32> to vector<8x128xf32>
    %94 = vector.broadcast %92 : vector<1x128xf32> to vector<8x128xf32>
    %95 = arith.addf %93, %94 : vector<8x128xf32>
    %cst_30 = arith.constant 2.000000e+00 : f32
    %96 = vector.broadcast %cst_30 : f32 to vector<8x128xf32>
    %97 = arith.mulf %96, %86 : vector<8x128xf32>
    %98 = arith.subf %95, %97 : vector<8x128xf32>
    %cst_31 = arith.constant 0.000000e+00 : f32
    %99 = vector.broadcast %cst_31 : f32 to vector<8x128xf32>
    %100 = arith.maximumf %98, %99 : vector<8x128xf32>
    %101 = math.sqrt %100 : vector<8x128xf32>
    %cst_32 = arith.constant 0.000000e+00 : f32
    %102 = vector.broadcast %cst_32 : f32 to vector<8x128xf32>
    %103 = arith.subf %102, %101 : vector<8x128xf32>
    %c0_33 = arith.constant 0 : index
    %c0_34 = arith.constant 0 : index
    %104 = vector.load %arg5[%c0_33, %c0_34] : memref<8x128xf32, #tpu.memory_space<vmem>>, vector<8x128xf32>
    tpu.vector_store %arg5[%c0_33, %c0_34], %103 {strides = array<i32>} : memref<8x128xf32, #tpu.memory_space<vmem>>, vector<8x128xf32>,
    return
  }
  func.func @transform_0(%arg0: i32, %arg1: memref<6xi32, #tpu.memory_space<smem>>) -> (i32, i32) {
    %c0_i32 = arith.constant 0 : i32
    %c0_i32_0 = arith.constant 0 : i32
    %c0_i32_1 = arith.constant 0 : i32
    return %c0_i32, %c0_i32_0 : i32, i32
  }
  func.func @transform_1(%arg0: i32, %arg1: memref<6xi32, #tpu.memory_space<smem>>) -> (i32, i32) {
    %c0_i32 = arith.constant 0 : i32
    %c0_i32_0 = arith.constant 0 : i32
    %c0_i32_1 = arith.constant 0 : i32
    return %c0_i32, %c0_i32_0 : i32, i32
  }
  func.func @transform_2(%arg0: i32, %arg1: memref<6xi32, #tpu.memory_space<smem>>) -> (i32, i32) {
    %c0_i32 = arith.constant 0 : i32
    %c0_i32_0 = arith.constant 0 : i32
    %c0_i32_1 = arith.constant 0 : i32
    return %c0_i32, %c0_i32_0 : i32, i32
  }
  func.func @transform_3(%arg0: i32, %arg1: memref<6xi32, #tpu.memory_space<smem>>) -> (i32, i32) {
    %c0_i32 = arith.constant 0 : i32
    %c0_i32_0 = arith.constant 0 : i32
    %c0_i32_1 = arith.constant 0 : i32
    return %c0_i32, %c0_i32_0 : i32, i32
  }
}

</mosaic_0001>

<llo_original>
// kernel: tpu_custom_call.1
$region0: #{tpu_custom_call.1}
  #allocation0 [shape = 'u32[]', space=smem, size = 0x4, offset = 0x4, fixed_abs, tag = 'smem constant byte address 0x4 - core index']
  #allocation1 [shape = 'u32[144,128]{1,0:T(1,128)}', space=vmem, size = 0x12000, scoped, tag = 'internal scratch']
  #allocation2 [shape = 's32[1]{0}', space=sflag, size = 0x4, scoped, tag = 'scoped memory for tpu_custom_call.1']
  #allocation3 [shape = 'u8[512]{0}', space=smem, size = 0x200, scoped, tag = 'prefetched SMEM operand 0']
  %s0 = inlined_call_operand.hbm [shape: s32[6], index: 0, kind: input, shape index: {}]
  %s1 = inlined_call_operand.hbm [shape: f32[16,1024], index: 1, kind: input, shape index: {}]
  %s2 = inlined_call_operand.hbm [shape: f32[1024,128], index: 2, kind: input, shape index: {}]
  %s3 = inlined_call_operand.vmem [shape: f32[1,128], index: 3, kind: input, shape index: {}]
  %s4 = inlined_call_operand.hbm [shape: f32[8,128], index: 4, kind: output, shape index: {}]
  %s5 = sld [smem:[#allocation0]]
  $region30: #{tpu_custom_call.1} parent=0
    _
  %s7 = ssub.s32 1, %s5
  %s8 = scalar_select 0, %s7, %s5
  %10 = dma.hbm_to_smem %s0, 16, [#allocation3], [#allocation2]
  %11 = dma.done [#allocation2], 16
  %12 = sfence
  $region1: #{tpu_custom_call.1} parent=0
    #allocation4 [shape = 'u8[65536]{0}', space=vmem, size = 0x10000, scoped, tag = 'input window, operand 1, single buffered']
    #allocation5 [shape = 's32[1]{0}', space=sflag, size = 0x4, scoped, tag = 'scoped memory for tpu_custom_call.1']
    #allocation6 [shape = 's32[1]{0}', space=sflag, size = 0x4, scoped, tag = 'scoped memory for tpu_custom_call.1']
    #allocation7 [shape = 'u8[524288]{0}', space=vmem, size = 0x80000, scoped, tag = 'input window, operand 2, single buffered']
    #allocation8 [shape = 's32[1]{0}', space=sflag, size = 0x4, scoped, tag = 'scoped memory for tpu_custom_call.1']
    #allocation9 [shape = 'u8[4096]{0}', space=vmem, size = 0x1000, scoped, tag = 'output window, operand 0, single buffered']
    %13 = vsyncpa [#allocation5], 0
    %14 = vsyncpa [#allocation8], 0
    %15 = vsyncpa [#allocation6], 0
    // Predicated region
    $region2: #{tpu_custom_call.1} parent=1 // pred_check
      _
    $region3: #{tpu_custom_call.1} parent=1 // pred_check_branch
      %17 = sbr.rel (0) target = $region5
    $region4: #{tpu_custom_call.1} parent=1 // pred_region
      %s19 = ssub.s32 2048, 2048
      %20 = vsyncadd [#allocation5], %s19
      %s21 = sshll.u32 [#allocation4], 4
      %s22 = int_to_ptr.vmem [resolvable:$true] %s21
      %27 = dma.hbm_to_vmem [thread:$0]  %s1, 2048, %s22, [#allocation5], 1024, 1024, 64
    $region5: #{tpu_custom_call.1} parent=1 // pred_fallthru
      _
    // Predicated region
    $region6: #{tpu_custom_call.1} parent=1 // pred_check
      _
    $region7: #{tpu_custom_call.1} parent=1 // pred_check_branch
      %29 = sbr.rel (0) target = $region9
    $region8: #{tpu_custom_call.1} parent=1 // pred_region
      %s31 = ssub.s32 16384, 16384
      %32 = vsyncadd [#allocation8], %s31
      %s33 = sshll.u32 [#allocation7], 4
      %s34 = int_to_ptr.vmem [resolvable:$true] %s33
      %39 = dma.hbm_to_vmem [thread:$0]  %s2, 16384, %s34, [#allocation8], 128, 128, 8
    $region9: #{tpu_custom_call.1} parent=1 // pred_fallthru
      _
    // Predicated region
    $region10: #{tpu_custom_call.1} parent=1 // pred_check
      _
    $region11: #{tpu_custom_call.1} parent=1 // pred_check_branch
      %41 = sbr.rel (0) target = $region13
    $region12: #{tpu_custom_call.1} parent=1 // pred_region
      _
    $region13: #{tpu_custom_call.1} parent=1 // pred_fallthru
      _
    // Predicated region
    $region14: #{tpu_custom_call.1} parent=1 // pred_check
      _
    $region15: #{tpu_custom_call.1} parent=1 // pred_check_branch
      %43 = sbr.rel (0) target = $region17
    $region16: #{tpu_custom_call.1} parent=1 // pred_region
      %44 = dma.done [#allocation5], 2048
    $region17: #{tpu_custom_call.1} parent=1 // pred_fallthru
      _
    // Predicated region
    $region18: #{tpu_custom_call.1} parent=1 // pred_check
      _
    $region19: #{tpu_custom_call.1} parent=1 // pred_check_branch
      %46 = sbr.rel (0) target = $region21
    $region20: #{tpu_custom_call.1} parent=1 // pred_region
      %47 = dma.done [#allocation8], 16384
    $region21: #{tpu_custom_call.1} parent=1 // pred_fallthru
      _
    %v48 = vld [vmem:[#allocation4] sm:$0xff]
    %v49 = vld [vmem:[#allocation4 + $0x8] sm:$0xff]
    %v50 = vld [vmem:[#allocation4 + $0x10] sm:$0xff]
    %v51 = vld [vmem:[#allocation4 + $0x18] sm:$0xff]
    %v52 = vld [vmem:[#allocation4 + $0x20] sm:$0xff]
    %v53 = vld [vmem:[#allocation4 + $0x28] sm:$0xff]
    %v54 = vld [vmem:[#allocation4 + $0x30] sm:$0xff]
    %v55 = vld [vmem:[#allocation4 + $0x38] sm:$0xff]
    %v56 = vld [vmem:[#allocation4 + $0x40] sm:$0xff]
    %v57 = vld [vmem:[#allocation4 + $0x48] sm:$0xff]
    %v58 = vld [vmem:[#allocation4 + $0x50] sm:$0xff]
    %v59 = vld [vmem:[#allocation4 + $0x58] sm:$0xff]
    %v60 = vld [vmem:[#allocation4 + $0x60] sm:$0xff]
    %v61 = vld [vmem:[#allocation4 + $0x68] sm:$0xff]
    %v62 = vld [vmem:[#allocation4 + $0x70] sm:$0xff]
    %v63 = vld [vmem:[#allocation4 + $0x78] sm:$0xff]
    %v64 = vld [vmem:[#allocation7] sm:$0xff]
    %v65 = vld [vmem:[#allocation7 + $0x8] sm:$0xff]
    %v66 = vld [vmem:[#allocation7 + $0x10] sm:$0xff]
    %v67 = vld [vmem:[#allocation7 + $0x18] sm:$0xff]
    %v68 = vld [vmem:[#allocation7 + $0x20] sm:$0xff]
    %v69 = vld [vmem:[#allocation7 + $0x28] sm:$0xff]
    %v70 = vld [vmem:[#allocation7 + $0x30] sm:$0xff]
    %v71 = vld [vmem:[#allocation7 + $0x38] sm:$0xff]
    %v72 = vld [vmem:[#allocation7 + $0x40] sm:$0xff]
    %v73 = vld [vmem:[#allocation7 + $0x48] sm:$0xff]
    %v74 = vld [vmem:[#allocation7 + $0x50] sm:$0xff]
    %v75 = vld [vmem:[#allocation7 + $0x58] sm:$0xff]
    %v76 = vld [vmem:[#allocation7 + $0x60] sm:$0xff]
    %v77 = vld [vmem:[#allocation7 + $0x68] sm:$0xff]
    %v78 = vld [vmem:[#allocation7 + $0x70] sm:$0xff]
    %v79 = vld [vmem:[#allocation7 + $0x78] sm:$0xff]
    %v80 = vld [vmem:[#allocation7 + $0x80] sm:$0xff]
    %v81 = vld [vmem:[#allocation7 + $0x88] sm:$0xff]
    %v82 = vld [vmem:[#allocation7 + $0x90] sm:$0xff]
    %v83 = vld [vmem:[#allocation7 + $0x98] sm:$0xff]
    %v84 = vld [vmem:[#allocation7 + $0xa0] sm:$0xff]
    %v85 = vld [vmem:[#allocation7 + $0xa8] sm:$0xff]
    %v86 = vld [vmem:[#allocation7 + $0xb0] sm:$0xff]
    %v87 = vld [vmem:[#allocation7 + $0xb8] sm:$0xff]
    %v88 = vld [vmem:[#allocation7 + $0xc0] sm:$0xff]
    %v89 = vld [vmem:[#allocation7 + $0xc8] sm:$0xff]
    %v90 = vld [vmem:[#allocation7 + $0xd0] sm:$0xff]
    %v91 = vld [vmem:[#allocation7 + $0xd8] sm:$0xff]
    %v92 = vld [vmem:[#allocation7 + $0xe0] sm:$0xff]
    %v93 = vld [vmem:[#allocation7 + $0xe8] sm:$0xff]
    %v94 = vld [vmem:[#allocation7 + $0xf0] sm:$0xff]
    %v95 = vld [vmem:[#allocation7 + $0xf8] sm:$0xff]
    %v96 = vld [vmem:[#allocation7 + $0x100] sm:$0xff]
    %v97 = vld [vmem:[#allocation7 + $0x108] sm:$0xff]
    %v98 = vld [vmem:[#allocation7 + $0x110] sm:$0xff]
    %v99 = vld [vmem:[#allocation7 + $0x118] sm:$0xff]
    %v100 = vld [vmem:[#allocation7 + $0x120] sm:$0xff]
    %v101 = vld [vmem:[#allocation7 + $0x128] sm:$0xff]
    %v102 = vld [vmem:[#allocation7 + $0x130] sm:$0xff]
    %v103 = vld [vmem:[#allocation7 + $0x138] sm:$0xff]
    %v104 = vld [vmem:[#allocation7 + $0x140] sm:$0xff]
    %v105 = vld [vmem:[#allocation7 + $0x148] sm:$0xff]
    %v106 = vld [vmem:[#allocation7 + $0x150] sm:$0xff]
    %v107 = vld [vmem:[#allocation7 + $0x158] sm:$0xff]
    %v108 = vld [vmem:[#allocation7 + $0x160] sm:$0xff]
    %v109 = vld [vmem:[#allocation7 + $0x168] sm:$0xff]
    %v110 = vld [vmem:[#allocation7 + $0x170] sm:$0xff]
    %v111 = vld [vmem:[#allocation7 + $0x178] sm:$0xff]
    %v112 = vld [vmem:[#allocation7 + $0x180] sm:$0xff]
    %v113 = vld [vmem:[#allocation7 + $0x188] sm:$0xff]
    %v114 = vld [vmem:[#allocation7 + $0x190] sm:$0xff]
    %v115 = vld [vmem:[#allocation7 + $0x198] sm:$0xff]
    %v116 = vld [vmem:[#allocation7 + $0x1a0] sm:$0xff]
    %v117 = vld [vmem:[#allocation7 + $0x1a8] sm:$0xff]
    %v118 = vld [vmem:[#allocation7 + $0x1b0] sm:$0xff]
    %v119 = vld [vmem:[#allocation7 + $0x1b8] sm:$0xff]
    %v120 = vld [vmem:[#allocation7 + $0x1c0] sm:$0xff]
    %v121 = vld [vmem:[#allocation7 + $0x1c8] sm:$0xff]
    %v122 = vld [vmem:[#allocation7 + $0x1d0] sm:$0xff]
    %v123 = vld [vmem:[#allocation7 + $0x1d8] sm:$0xff]
    %v124 = vld [vmem:[#allocation7 + $0x1e0] sm:$0xff]
    %v125 = vld [vmem:[#allocation7 + $0x1e8] sm:$0xff]
    %v126 = vld [vmem:[#allocation7 + $0x1f0] sm:$0xff]
    %v127 = vld [vmem:[#allocation7 + $0x1f8] sm:$0xff]
    %v128 = vld [vmem:[#allocation7 + $0x200] sm:$0xff]
    %v129 = vld [vmem:[#allocation7 + $0x208] sm:$0xff]
    %v130 = vld [vmem:[#allocation7 + $0x210] sm:$0xff]
    %v131 = vld [vmem:[#allocation7 + $0x218] sm:$0xff]
    %v132 = vld [vmem:[#allocation7 + $0x220] sm:$0xff]
    %v133 = vld [vmem:[#allocation7 + $0x228] sm:$0xff]
    %v134 = vld [vmem:[#allocation7 + $0x230] sm:$0xff]
    %v135 = vld [vmem:[#allocation7 + $0x238] sm:$0xff]
    %v136 = vld [vmem:[#allocation7 + $0x240] sm:$0xff]
    %v137 = vld [vmem:[#allocation7 + $0x248] sm:$0xff]
    %v138 = vld [vmem:[#allocation7 + $0x250] sm:$0xff]
    %v139 = vld [vmem:[#allocation7 + $0x258] sm:$0xff]
    %v140 = vld [vmem:[#allocation7 + $0x260] sm:$0xff]
    %v141 = vld [vmem:[#allocation7 + $0x268] sm:$0xff]
    %v142 = vld [vmem:[#allocation7 + $0x270] sm:$0xff]
    %v143 = vld [vmem:[#allocation7 + $0x278] sm:$0xff]
    %v144 = vld [vmem:[#allocation7 + $0x280] sm:$0xff]
    %v145 = vld [vmem:[#allocation7 + $0x288] sm:$0xff]
    %v146 = vld [vmem:[#allocation7 + $0x290] sm:$0xff]
    %v147 = vld [vmem:[#allocation7 + $0x298] sm:$0xff]
    %v148 = vld [vmem:[#allocation7 + $0x2a0] sm:$0xff]
    %v149 = vld [vmem:[#allocation7 + $0x2a8] sm:$0xff]
    %v150 = vld [vmem:[#allocation7 + $0x2b0] sm:$0xff]
    %v151 = vld [vmem:[#allocation7 + $0x2b8] sm:$0xff]
    %v152 = vld [vmem:[#allocation7 + $0x2c0] sm:$0xff]
    %v153 = vld [vmem:[#allocation7 + $0x2c8] sm:$0xff]
    %v154 = vld [vmem:[#allocation7 + $0x2d0] sm:$0xff]
    %v155 = vld [vmem:[#allocation7 + $0x2d8] sm:$0xff]
    %v156 = vld [vmem:[#allocation7 + $0x2e0] sm:$0xff]
    %v157 = vld [vmem:[#allocation7 + $0x2e8] sm:$0xff]
    %v158 = vld [vmem:[#allocation7 + $0x2f0] sm:$0xff]
    %v159 = vld [vmem:[#allocation7 + $0x2f8] sm:$0xff]
    %v160 = vld [vmem:[#allocation7 + $0x300] sm:$0xff]
    %v161 = vld [vmem:[#allocation7 + $0x308] sm:$0xff]
    %v162 = vld [vmem:[#allocation7 + $0x310] sm:$0xff]
    %v163 = vld [vmem:[#allocation7 + $0x318] sm:$0xff]
    %v164 = vld [vmem:[#allocation7 + $0x320] sm:$0xff]
    %v165 = vld [vmem:[#allocation7 + $0x328] sm:$0xff]
    %v166 = vld [vmem:[#allocation7 + $0x330] sm:$0xff]
    %v167 = vld [vmem:[#allocation7 + $0x338] sm:$0xff]
    %v168 = vld [vmem:[#allocation7 + $0x340] sm:$0xff]
    %v169 = vld [vmem:[#allocation7 + $0x348] sm:$0xff]
    %v170 = vld [vmem:[#allocation7 + $0x350] sm:$0xff]
    %v171 = vld [vmem:[#allocation7 + $0x358] sm:$0xff]
    %v172 = vld [vmem:[#allocation7 + $0x360] sm:$0xff]
    %v173 = vld [vmem:[#allocation7 + $0x368] sm:$0xff]
    %v174 = vld [vmem:[#allocation7 + $0x370] sm:$0xff]
    %v175 = vld [vmem:[#allocation7 + $0x378] sm:$0xff]
    %v176 = vld [vmem:[#allocation7 + $0x380] sm:$0xff]
    %v177 = vld [vmem:[#allocation7 + $0x388] sm:$0xff]
    %v178 = vld [vmem:[#allocation7 + $0x390] sm:$0xff]
    %v179 = vld [vmem:[#allocation7 + $0x398] sm:$0xff]
    %v180 = vld [vmem:[#allocation7 + $0x3a0] sm:$0xff]
    %v181 = vld [vmem:[#allocation7 + $0x3a8] sm:$0xff]
    %v182 = vld [vmem:[#allocation7 + $0x3b0] sm:$0xff]
    %v183 = vld [vmem:[#allocation7 + $0x3b8] sm:$0xff]
    %v184 = vld [vmem:[#allocation7 + $0x3c0] sm:$0xff]
    %v185 = vld [vmem:[#allocation7 + $0x3c8] sm:$0xff]
    %v186 = vld [vmem:[#allocation7 + $0x3d0] sm:$0xff]
    %v187 = vld [vmem:[#allocation7 + $0x3d8] sm:$0xff]
    %v188 = vld [vmem:[#allocation7 + $0x3e0] sm:$0xff]
    %v189 = vld [vmem:[#allocation7 + $0x3e8] sm:$0xff]
    %v190 = vld [vmem:[#allocation7 + $0x3f0] sm:$0xff]
    %v191 = vld [vmem:[#allocation7 + $0x3f8] sm:$0xff]
    %v192 = vld [vmem:[%s3] sm:$0x1]
    %v194 = vlaneseq
    %v195 = vshrl.u32 %v194, 7
    %v196 = vsub.s32 0, %v195
    %v197 = vrot.slane %v192, %v196
    %199 = vmatprep.subr.mxu0 0.0
    %200 = vmatpush1.msra.mxu0 %v79
    %201 = vmatprep.subr.mxu0 0.0
    %202 = vmatpush1.msra.mxu0 %v78
    %203 = vmatprep.subr.mxu0 0.0
    %204 = vmatpush1.msra.mxu0 %v77
    %205 = vmatprep.subr.mxu0 0.0
    %206 = vmatpush1.msra.mxu0 %v76
    %207 = vmatprep.subr.mxu0 0.0
    %208 = vmatpush1.msra.mxu0 %v75
    %209 = vmatprep.subr.mxu0 0.0
    %210 = vmatpush1.msra.mxu0 %v74
    %211 = vmatprep.subr.mxu0 0.0
    %212 = vmatpush1.msra.mxu0 %v73
    %213 = vmatprep.subr.mxu0 0.0
    %214 = vmatpush1.msra.mxu0 %v72
    %215 = vmatprep.subr.mxu0 0.0
    %216 = vmatpush1.msra.mxu0 %v71
    %217 = vmatprep.subr.mxu0 0.0
    %218 = vmatpush1.msra.mxu0 %v70
    %219 = vmatprep.subr.mxu0 0.0
    %220 = vmatpush1.msra.mxu0 %v69
    %221 = vmatprep.subr.mxu0 0.0
    %222 = vmatpush1.msra.mxu0 %v68
    %223 = vmatprep.subr.mxu0 0.0
    %224 = vmatpush1.msra.mxu0 %v67
    %225 = vmatprep.subr.mxu0 0.0
    %226 = vmatpush1.msra.mxu0 %v66
    %227 = vmatprep.subr.mxu0 0.0
    %228 = vmatpush1.msra.mxu0 %v65
    %229 = vmatprep.subr.mxu0 0.0
    %230 = vmatpush1.msra.mxu0 %v64
    %231 = vmatprep.subr.mxu0 0.0
    %232 = vmatpush2.msra.mxu0 %v95
    %233 = vmatprep.subr.mxu0 0.0
    %234 = vmatpush2.msra.mxu0 %v94
    %235 = vmatprep.subr.mxu0 0.0
    %236 = vmatpush2.msra.mxu0 %v93
    %237 = vmatprep.subr.mxu0 0.0
    %238 = vmatpush2.msra.mxu0 %v92
    %239 = vmatprep.subr.mxu0 0.0
    %240 = vmatpush2.msra.mxu0 %v91
    %241 = vmatprep.subr.mxu0 0.0
    %242 = vmatpush2.msra.mxu0 %v90
    %243 = vmatprep.subr.mxu0 0.0
    %244 = vmatpush2.msra.mxu0 %v89
    %245 = vmatprep.subr.mxu0 0.0
    %246 = vmatpush2.msra.mxu0 %v88
    %247 = vmatprep.subr.mxu0 0.0
    %248 = vmatpush2.msra.mxu0 %v87
    %249 = vmatprep.subr.mxu0 0.0
    %250 = vmatpush2.msra.mxu0 %v86
    %251 = vmatprep.subr.mxu0 0.0
    %252 = vmatpush2.msra.mxu0 %v85
    %253 = vmatprep.subr.mxu0 0.0
    %254 = vmatpush2.msra.mxu0 %v84
    %255 = vmatprep.subr.mxu0 0.0
    %256 = vmatpush2.msra.mxu0 %v83
    %257 = vmatprep.subr.mxu0 0.0
    %258 = vmatpush2.msra.mxu0 %v82
    %259 = vmatprep.subr.mxu0 0.0
    %260 = vmatpush2.msra.mxu0 %v81
    %261 = vmatprep.subr.mxu0 0.0
    %262 = vmatpush2.msra.mxu0 %v80
    %263 = vmatprep.mubr.f32.mxu0 %v49
    %264 = vmatmul.mubr.f32.gmra.mxu0 %v48
    %v265 = vpop.f32.mrf.mxu0
    %v266 = vadd.f32 %v197, %v265
    %v267 = vpop.f32.mrf.mxu0
    %268 = vmatprep.mubr.f32.mxu0 %v57
    %269 = vmatmul.mubr.f32.gmra.mxu0 %v56
    %v270 = vpop.f32.mrf.mxu0
    %v271 = vadd.f32 %v197, %v270
    %v272 = vpop.f32.mrf.mxu0
    %273 = vdwg.mxu0
    %274 = vmatprep.subr.mxu0 0.0
    %275 = vmatpush1.msra.mxu0 %v111
    %276 = vmatprep.subr.mxu0 0.0
    %277 = vmatpush1.msra.mxu0 %v110
    %278 = vmatprep.subr.mxu0 0.0
    %279 = vmatpush1.msra.mxu0 %v109
    %280 = vmatprep.subr.mxu0 0.0
    %281 = vmatpush1.msra.mxu0 %v108
    %282 = vmatprep.subr.mxu0 0.0
    %283 = vmatpush1.msra.mxu0 %v107
    %284 = vmatprep.subr.mxu0 0.0
    %285 = vmatpush1.msra.mxu0 %v106
    %286 = vmatprep.subr.mxu0 0.0
    %287 = vmatpush1.msra.mxu0 %v105
    %288 = vmatprep.subr.mxu0 0.0
    %289 = vmatpush1.msra.mxu0 %v104
    %290 = vmatprep.subr.mxu0 0.0
    %291 = vmatpush1.msra.mxu0 %v103
    %292 = vmatprep.subr.mxu0 0.0
    %293 = vmatpush1.msra.mxu0 %v102
    %294 = vmatprep.subr.mxu0 0.0
    %295 = vmatpush1.msra.mxu0 %v101
    %296 = vmatprep.subr.mxu0 0.0
    %297 = vmatpush1.msra.mxu0 %v100
    %298 = vmatprep.subr.mxu0 0.0
    %299 = vmatpush1.msra.mxu0 %v99
    %300 = vmatprep.subr.mxu0 0.0
    %301 = vmatpush1.msra.mxu0 %v98
    %302 = vmatprep.subr.mxu0 0.0
    %303 = vmatpush1.msra.mxu0 %v97
    %304 = vmatprep.subr.mxu0 0.0
    %305 = vmatpush1.msra.mxu0 %v96
    %306 = vmatprep.subr.mxu0 0.0
    %307 = vmatpush2.msra.mxu0 %v127
    %308 = vmatprep.subr.mxu0 0.0
    %309 = vmatpush2.msra.mxu0 %v126
    %310 = vmatprep.subr.mxu0 0.0
    %311 = vmatpush2.msra.mxu0 %v125
    %312 = vmatprep.subr.mxu0 0.0
    %313 = vmatpush2.msra.mxu0 %v124
    %314 = vmatprep.subr.mxu0 0.0
    %315 = vmatpush2.msra.mxu0 %v123
    %316 = vmatprep.subr.mxu0 0.0
    %317 = vmatpush2.msra.mxu0 %v122
    %318 = vmatprep.subr.mxu0 0.0
    %319 = vmatpush2.msra.mxu0 %v121
    %320 = vmatprep.subr.mxu0 0.0
    %321 = vmatpush2.msra.mxu0 %v120
    %322 = vmatprep.subr.mxu0 0.0
    %323 = vmatpush2.msra.mxu0 %v119
    %324 = vmatprep.subr.mxu0 0.0
    %325 = vmatpush2.msra.mxu0 %v118
    %326 = vmatprep.subr.mxu0 0.0
    %327 = vmatpush2.msra.mxu0 %v117
    %328 = vmatprep.subr.mxu0 0.0
    %329 = vmatpush2.msra.mxu0 %v116
    %330 = vmatprep.subr.mxu0 0.0
    %331 = vmatpush2.msra.mxu0 %v115
    %332 = vmatprep.subr.mxu0 0.0
    %333 = vmatpush2.msra.mxu0 %v114
    %334 = vmatprep.subr.mxu0 0.0
    %335 = vmatpush2.msra.mxu0 %v113
    %336 = vmatprep.subr.mxu0 0.0
    %337 = vmatpush2.msra.mxu0 %v112
    %338 = vmatprep.mubr.f32.mxu0 %v51
    %339 = vmatmul.mubr.f32.gmra.mxu0 %v50
    %v340 = vpop.f32.mrf.mxu0
    %v341 = vadd.f32 %v266, %v340
    %v342 = vpop.f32.mrf.mxu0
    %343 = vmatprep.mubr.f32.mxu0 %v59
    %344 = vmatmul.mubr.f32.gmra.mxu0 %v58
    %v345 = vpop.f32.mrf.mxu0
    %v346 = vadd.f32 %v271, %v345
    %v347 = vpop.f32.mrf.mxu0
    %348 = vdwg.mxu0
    %349 = vmatprep.subr.mxu0 0.0
    %350 = vmatpush1.msra.mxu0 %v143
    %351 = vmatprep.subr.mxu0 0.0
    %352 = vmatpush1.msra.mxu0 %v142
    %353 = vmatprep.subr.mxu0 0.0
    %354 = vmatpush1.msra.mxu0 %v141
    %355 = vmatprep.subr.mxu0 0.0
    %356 = vmatpush1.msra.mxu0 %v140
    %357 = vmatprep.subr.mxu0 0.0
    %358 = vmatpush1.msra.mxu0 %v139
    %359 = vmatprep.subr.mxu0 0.0
    %360 = vmatpush1.msra.mxu0 %v138
    %361 = vmatprep.subr.mxu0 0.0
    %362 = vmatpush1.msra.mxu0 %v137
    %363 = vmatprep.subr.mxu0 0.0
    %364 = vmatpush1.msra.mxu0 %v136
    %365 = vmatprep.subr.mxu0 0.0
    %366 = vmatpush1.msra.mxu0 %v135
    %367 = vmatprep.subr.mxu0 0.0
    %368 = vmatpush1.msra.mxu0 %v134
    %369 = vmatprep.subr.mxu0 0.0
    %370 = vmatpush1.msra.mxu0 %v133
    %371 = vmatprep.subr.mxu0 0.0
    %372 = vmatpush1.msra.mxu0 %v132
    %373 = vmatprep.subr.mxu0 0.0
    %374 = vmatpush1.msra.mxu0 %v131
    %375 = vmatprep.subr.mxu0 0.0
    %376 = vmatpush1.msra.mxu0 %v130
    %377 = vmatprep.subr.mxu0 0.0
    %378 = vmatpush1.msra.mxu0 %v129
    %379 = vmatprep.subr.mxu0 0.0
    %380 = vmatpush1.msra.mxu0 %v128
    %381 = vmatprep.subr.mxu0 0.0
    %382 = vmatpush2.msra.mxu0 %v159
    %383 = vmatprep.subr.mxu0 0.0
    %384 = vmatpush2.msra.mxu0 %v158
    %385 = vmatprep.subr.mxu0 0.0
    %386 = vmatpush2.msra.mxu0 %v157
    %387 = vmatprep.subr.mxu0 0.0
    %388 = vmatpush2.msra.mxu0 %v156
    %389 = vmatprep.subr.mxu0 0.0
    %390 = vmatpush2.msra.mxu0 %v155
    %391 = vmatprep.subr.mxu0 0.0
    %392 = vmatpush2.msra.mxu0 %v154
    %393 = vmatprep.subr.mxu0 0.0
    %394 = vmatpush2.msra.mxu0 %v153
    %395 = vmatprep.subr.mxu0 0.0
    %396 = vmatpush2.msra.mxu0 %v152
    %397 = vmatprep.subr.mxu0 0.0
    %398 = vmatpush2.msra.mxu0 %v151
    %399 = vmatprep.subr.mxu0 0.0
    %400 = vmatpush2.msra.mxu0 %v150
    %401 = vmatprep.subr.mxu0 0.0
    %402 = vmatpush2.msra.mxu0 %v149
    %403 = vmatprep.subr.mxu0 0.0
    %404 = vmatpush2.msra.mxu0 %v148
    %405 = vmatprep.subr.mxu0 0.0
    %406 = vmatpush2.msra.mxu0 %v147
    %407 = vmatprep.subr.mxu0 0.0
    %408 = vmatpush2.msra.mxu0 %v146
    %409 = vmatprep.subr.mxu0 0.0
    %410 = vmatpush2.msra.mxu0 %v145
    %411 = vmatprep.subr.mxu0 0.0
    %412 = vmatpush2.msra.mxu0 %v144
    %413 = vmatprep.mubr.f32.mxu0 %v53
    %414 = vmatmul.mubr.f32.gmra.mxu0 %v52
    %v415 = vpop.f32.mrf.mxu0
    %v416 = vadd.f32 %v341, %v415
    %v417 = vpop.f32.mrf.mxu0
    %418 = vmatprep.mubr.f32.mxu0 %v61
    %419 = vmatmul.mubr.f32.gmra.mxu0 %v60
    %v420 = vpop.f32.mrf.mxu0
    %v421 = vadd.f32 %v346, %v420
    %v422 = vpop.f32.mrf.mxu0
    %423 = vdwg.mxu0
    %424 = vmatprep.subr.mxu0 0.0
    %425 = vmatpush1.msra.mxu0 %v175
    %426 = vmatprep.subr.mxu0 0.0
    %427 = vmatpush1.msra.mxu0 %v174
    %428 = vmatprep.subr.mxu0 0.0
    %429 = vmatpush1.msra.mxu0 %v173
    %430 = vmatprep.subr.mxu0 0.0
    %431 = vmatpush1.msra.mxu0 %v172
    %432 = vmatprep.subr.mxu0 0.0
    %433 = vmatpush1.msra.mxu0 %v171
    %434 = vmatprep.subr.mxu0 0.0
    %435 = vmatpush1.msra.mxu0 %v170
    %436 = vmatprep.subr.mxu0 0.0
    %437 = vmatpush1.msra.mxu0 %v169
    %438 = vmatprep.subr.mxu0 0.0
    %439 = vmatpush1.msra.mxu0 %v168
    %440 = vmatprep.subr.mxu0 0.0
    %441 = vmatpush1.msra.mxu0 %v167
    %442 = vmatprep.subr.mxu0 0.0
    %443 = vmatpush1.msra.mxu0 %v166
    %444 = vmatprep.subr.mxu0 0.0
    %445 = vmatpush1.msra.mxu0 %v165
    %446 = vmatprep.subr.mxu0 0.0
    %447 = vmatpush1.msra.mxu0 %v164
    %448 = vmatprep.subr.mxu0 0.0
    %449 = vmatpush1.msra.mxu0 %v163
    %450 = vmatprep.subr.mxu0 0.0
    %451 = vmatpush1.msra.mxu0 %v162
    %452 = vmatprep.subr.mxu0 0.0
    %453 = vmatpush1.msra.mxu0 %v161
    %454 = vmatprep.subr.mxu0 0.0
    %455 = vmatpush1.msra.mxu0 %v160
    %456 = vmatprep.subr.mxu0 0.0
    %457 = vmatpush2.msra.mxu0 %v191
    %458 = vmatprep.subr.mxu0 0.0
    %459 = vmatpush2.msra.mxu0 %v190
    %460 = vmatprep.subr.mxu0 0.0
    %461 = vmatpush2.msra.mxu0 %v189
    %462 = vmatprep.subr.mxu0 0.0
    %463 = vmatpush2.msra.mxu0 %v188
    %464 = vmatprep.subr.mxu0 0.0
    %465 = vmatpush2.msra.mxu0 %v187
    %466 = vmatprep.subr.mxu0 0.0
    %467 = vmatpush2.msra.mxu0 %v186
    %468 = vmatprep.subr.mxu0 0.0
    %469 = vmatpush2.msra.mxu0 %v185
    %470 = vmatprep.subr.mxu0 0.0
    %471 = vmatpush2.msra.mxu0 %v184
    %472 = vmatprep.subr.mxu0 0.0
    %473 = vmatpush2.msra.mxu0 %v183
    %474 = vmatprep.subr.mxu0 0.0
    %475 = vmatpush2.msra.mxu0 %v182
    %476 = vmatprep.subr.mxu0 0.0
    %477 = vmatpush2.msra.mxu0 %v181
    %478 = vmatprep.subr.mxu0 0.0
    %479 = vmatpush2.msra.mxu0 %v180
    %480 = vmatprep.subr.mxu0 0.0
    %481 = vmatpush2.msra.mxu0 %v179
    %482 = vmatprep.subr.mxu0 0.0
    %483 = vmatpush2.msra.mxu0 %v178
    %484 = vmatprep.subr.mxu0 0.0
    %485 = vmatpush2.msra.mxu0 %v177
    %486 = vmatprep.subr.mxu0 0.0
    %487 = vmatpush2.msra.mxu0 %v176
    %488 = vmatprep.mubr.f32.mxu0 %v55
    %489 = vmatmul.mubr.f32.gmra.mxu0 %v54
    %v490 = vpop.f32.mrf.mxu0
    %v491 = vadd.f32 %v416, %v490
    %v492 = vpop.f32.mrf.mxu0
    %493 = vmatprep.mubr.f32.mxu0 %v63
    %494 = vmatmul.mubr.f32.gmra.mxu0 %v62
    %v495 = vpop.f32.mrf.mxu0
    %v496 = vadd.f32 %v421, %v495
    %v497 = vpop.f32.mrf.mxu0
    %498 = vdwg.mxu0
    %v499 = vmax.f32 %v491, 0.0
    %v500 = vmax.f32 %v496, 0.0
    %v501 = vlaneseq
    %v502 = vshrl.u32 %v501, 7
    %v503 = vadd.s32 %v502, 8
    %v504 = vadd.s32 %v502, 16
    %v505 = vadd.s32 %v502, 24
    %v506 = vadd.s32 %v502, 32
    %v507 = vadd.s32 %v502, 40
    %v508 = vadd.s32 %v502, 48
    %v509 = vadd.s32 %v502, 56
    %v510 = vadd.s32 %v502, 64
    %v511 = vadd.s32 %v502, 72
    %v512 = vadd.s32 %v502, 80
    %v513 = vadd.s32 %v502, 88
    %v514 = vadd.s32 %v502, 96
    %v515 = vadd.s32 %v502, 104
    %v516 = vadd.s32 %v502, 112
    %v517 = vadd.s32 %v502, 120
    %v518 = vlaneseq
    %v519 = vand.u32 %v518, 127
    %s520 = sld [smem:[#allocation3]]
    %vm521 = vcmp.eq.s32.totalorder %v519, 0
    %v522 = vstv %s520
    %vm523 = vcmp.eq.s32.totalorder %v502, %v522
    %vm524 = vcmp.eq.s32.totalorder %v503, %v522
    %vm525 = vcmp.eq.s32.totalorder %v504, %v522
    %vm526 = vcmp.eq.s32.totalorder %v505, %v522
    %vm527 = vcmp.eq.s32.totalorder %v506, %v522
    %vm528 = vcmp.eq.s32.totalorder %v507, %v522
    %vm529 = vcmp.eq.s32.totalorder %v508, %v522
    %vm530 = vcmp.eq.s32.totalorder %v509, %v522
    %vm531 = vcmp.eq.s32.totalorder %v510, %v522
    %vm532 = vcmp.eq.s32.totalorder %v511, %v522
    %vm533 = vcmp.eq.s32.totalorder %v512, %v522
    %vm534 = vcmp.eq.s32.totalorder %v513, %v522
    %vm535 = vcmp.eq.s32.totalorder %v514, %v522
    %vm536 = vcmp.eq.s32.totalorder %v515, %v522
    %vm537 = vcmp.eq.s32.totalorder %v516, %v522
    %vm538 = vcmp.eq.s32.totalorder %v517, %v522
    %vm539 = vmand %vm521, %vm523
    %vm540 = vmand %vm521, %vm524
    %vm541 = vmand %vm521, %vm525
    %vm542 = vmand %vm521, %vm526
    %vm543 = vmand %vm521, %vm527
    %vm544 = vmand %vm521, %vm528
    %vm545 = vmand %vm521, %vm529
    %vm546 = vmand %vm521, %vm530
    %vm547 = vmand %vm521, %vm531
    %vm548 = vmand %vm521, %vm532
    %vm549 = vmand %vm521, %vm533
    %vm550 = vmand %vm521, %vm534
    %vm551 = vmand %vm521, %vm535
    %vm552 = vmand %vm521, %vm536
    %vm553 = vmand %vm521, %vm537
    %vm554 = vmand %vm521, %vm538
    %v555 = vsel %vm539, 1.0, 0.0
    %v556 = vsel %vm540, 1.0, 0.0
    %v557 = vsel %vm541, 1.0, 0.0
    %v558 = vsel %vm542, 1.0, 0.0
    %v559 = vsel %vm543, 1.0, 0.0
    %v560 = vsel %vm544, 1.0, 0.0
    %v561 = vsel %vm545, 1.0, 0.0
    %v562 = vsel %vm546, 1.0, 0.0
    %v563 = vsel %vm547, 1.0, 0.0
    %v564 = vsel %vm548, 1.0, 0.0
    %v565 = vsel %vm549, 1.0, 0.0
    %v566 = vsel %vm550, 1.0, 0.0
    %v567 = vsel %vm551, 1.0, 0.0
    %v568 = vsel %vm552, 1.0, 0.0
    %v569 = vsel %vm553, 1.0, 0.0
    %v570 = vsel %vm554, 1.0, 0.0
    %v571 = vadd.f32 %v555, 0.0
    %v572 = vadd.f32 %v556, 0.0
    %v573 = vadd.f32 %v557, 0.0
    %v574 = vadd.f32 %v558, 0.0
    %v575 = vadd.f32 %v559, 0.0
    %v576 = vadd.f32 %v560, 0.0
    %v577 = vadd.f32 %v561, 0.0
    %v578 = vadd.f32 %v562, 0.0
    %v579 = vadd.f32 %v563, 0.0
    %v580 = vadd.f32 %v564, 0.0
    %v581 = vadd.f32 %v565, 0.0
    %v582 = vadd.f32 %v566, 0.0
    %v583 = vadd.f32 %v567, 0.0
    %v584 = vadd.f32 %v568, 0.0
    %v585 = vadd.f32 %v569, 0.0
    %v586 = vadd.f32 %v570, 0.0
    %s587 = sld [smem:[#allocation3 + $0x1]]
    %vm588 = vcmp.eq.s32.totalorder %v519, 1
    %v589 = vstv %s587
    %vm590 = vcmp.eq.s32.totalorder %v502, %v589
    %vm591 = vcmp.eq.s32.totalorder %v503, %v589
    %vm592 = vcmp.eq.s32.totalorder %v504, %v589
    %vm593 = vcmp.eq.s32.totalorder %v505, %v589
    %vm594 = vcmp.eq.s32.totalorder %v506, %v589
    %vm595 = vcmp.eq.s32.totalorder %v507, %v589
    %vm596 = vcmp.eq.s32.totalorder %v508, %v589
    %vm597 = vcmp.eq.s32.totalorder %v509, %v589
    %vm598 = vcmp.eq.s32.totalorder %v510, %v589
    %vm599 = vcmp.eq.s32.totalorder %v511, %v589
    %vm600 = vcmp.eq.s32.totalorder %v512, %v589
    %vm601 = vcmp.eq.s32.totalorder %v513, %v589
    %vm602 = vcmp.eq.s32.totalorder %v514, %v589
    %vm603 = vcmp.eq.s32.totalorder %v515, %v589
    %vm604 = vcmp.eq.s32.totalorder %v516, %v589
    %vm605 = vcmp.eq.s32.totalorder %v517, %v589
    %vm606 = vmand %vm588, %vm590
    %vm607 = vmand %vm588, %vm591
    %vm608 = vmand %vm588, %vm592
    %vm609 = vmand %vm588, %vm593
    %vm610 = vmand %vm588, %vm594
    %vm611 = vmand %vm588, %vm595
    %vm612 = vmand %vm588, %vm596
    %vm613 = vmand %vm588, %vm597
    %vm614 = vmand %vm588, %vm598
    %vm615 = vmand %vm588, %vm599
    %vm616 = vmand %vm588, %vm600
    %vm617 = vmand %vm588, %vm601
    %vm618 = vmand %vm588, %vm602
    %vm619 = vmand %vm588, %vm603
    %vm620 = vmand %vm588, %vm604
    %vm621 = vmand %vm588, %vm605
    %v622 = vsel %vm606, 1.0, 0.0
    %v623 = vsel %vm607, 1.0, 0.0
    %v624 = vsel %vm608, 1.0, 0.0
    %v625 = vsel %vm609, 1.0, 0.0
    %v626 = vsel %vm610, 1.0, 0.0
    %v627 = vsel %vm611, 1.0, 0.0
    %v628 = vsel %vm612, 1.0, 0.0
    %v629 = vsel %vm613, 1.0, 0.0
    %v630 = vsel %vm614, 1.0, 0.0
    %v631 = vsel %vm615, 1.0, 0.0
    %v632 = vsel %vm616, 1.0, 0.0
    %v633 = vsel %vm617, 1.0, 0.0
    %v634 = vsel %vm618, 1.0, 0.0
    %v635 = vsel %vm619, 1.0, 0.0
    %v636 = vsel %vm620, 1.0, 0.0
    %v637 = vsel %vm621, 1.0, 0.0
    %v638 = vadd.f32 %v571, %v622
    %v639 = vadd.f32 %v572, %v623
    %v640 = vadd.f32 %v573, %v624
    %v641 = vadd.f32 %v574, %v625
    %v642 = vadd.f32 %v575, %v626
    %v643 = vadd.f32 %v576, %v627
    %v644 = vadd.f32 %v577, %v628
    %v645 = vadd.f32 %v578, %v629
    %v646 = vadd.f32 %v579, %v630
    %v647 = vadd.f32 %v580, %v631
    %v648 = vadd.f32 %v581, %v632
    %v649 = vadd.f32 %v582, %v633
    %v650 = vadd.f32 %v583, %v634
    %v651 = vadd.f32 %v584, %v635
    %v652 = vadd.f32 %v585, %v636
    %v653 = vadd.f32 %v586, %v637
    %s654 = sld [smem:[#allocation3 + $0x2]]
    %vm655 = vcmp.eq.s32.totalorder %v519, 2
    %v656 = vstv %s654
    %vm657 = vcmp.eq.s32.totalorder %v502, %v656
    %vm658 = vcmp.eq.s32.totalorder %v503, %v656
    %vm659 = vcmp.eq.s32.totalorder %v504, %v656
    %vm660 = vcmp.eq.s32.totalorder %v505, %v656
    %vm661 = vcmp.eq.s32.totalorder %v506, %v656
    %vm662 = vcmp.eq.s32.totalorder %v507, %v656
    %vm663 = vcmp.eq.s32.totalorder %v508, %v656
    %vm664 = vcmp.eq.s32.totalorder %v509, %v656
    %vm665 = vcmp.eq.s32.totalorder %v510, %v656
    %vm666 = vcmp.eq.s32.totalorder %v511, %v656
    %vm667 = vcmp.eq.s32.totalorder %v512, %v656
    %vm668 = vcmp.eq.s32.totalorder %v513, %v656
    %vm669 = vcmp.eq.s32.totalorder %v514, %v656
    %vm670 = vcmp.eq.s32.totalorder %v515, %v656
    %vm671 = vcmp.eq.s32.totalorder %v516, %v656
    %vm672 = vcmp.eq.s32.totalorder %v517, %v656
    %vm673 = vmand %vm655, %vm657
    %vm674 = vmand %vm655, %vm658
    %vm675 = vmand %vm655, %vm659
    %vm676 = vmand %vm655, %vm660
    %vm677 = vmand %vm655, %vm661
    %vm678 = vmand %vm655, %vm662
    %vm679 = vmand %vm655, %vm663
    %vm680 = vmand %vm655, %vm664
    %vm681 = vmand %vm655, %vm665
    %vm682 = vmand %vm655, %vm666
    %vm683 = vmand %vm655, %vm667
    %vm684 = vmand %vm655, %vm668
    %vm685 = vmand %vm655, %vm669
    %vm686 = vmand %vm655, %vm670
    %vm687 = vmand %vm655, %vm671
    %vm688 = vmand %vm655, %vm672
    %v689 = vsel %vm673, 1.0, 0.0
    %v690 = vsel %vm674, 1.0, 0.0
    %v691 = vsel %vm675, 1.0, 0.0
    %v692 = vsel %vm676, 1.0, 0.0
    %v693 = vsel %vm677, 1.0, 0.0
    %v694 = vsel %vm678, 1.0, 0.0
    %v695 = vsel %vm679, 1.0, 0.0
    %v696 = vsel %vm680, 1.0, 0.0
    %v697 = vsel %vm681, 1.0, 0.0
    %v698 = vsel %vm682, 1.0, 0.0
    %v699 = vsel %vm683, 1.0, 0.0
    %v700 = vsel %vm684, 1.0, 0.0
    %v701 = vsel %vm685, 1.0, 0.0
    %v702 = vsel %vm686, 1.0, 0.0
    %v703 = vsel %vm687, 1.0, 0.0
    %v704 = vsel %vm688, 1.0, 0.0
    %v705 = vadd.f32 %v638, %v689
    %v706 = vadd.f32 %v639, %v690
    %v707 = vadd.f32 %v640, %v691
    %v708 = vadd.f32 %v641, %v692
    %v709 = vadd.f32 %v642, %v693
    %v710 = vadd.f32 %v643, %v694
    %v711 = vadd.f32 %v644, %v695
    %v712 = vadd.f32 %v645, %v696
    %v713 = vadd.f32 %v646, %v697
    %v714 = vadd.f32 %v647, %v698
    %v715 = vadd.f32 %v648, %v699
    %v716 = vadd.f32 %v649, %v700
    %v717 = vadd.f32 %v650, %v701
    %v718 = vadd.f32 %v651, %v702
    %v719 = vadd.f32 %v652, %v703
    %v720 = vadd.f32 %v653, %v704
    %s721 = sld [smem:[#allocation3 + $0x3]]
    %vm722 = vcmp.eq.s32.totalorder %v519, 3
    %v723 = vstv %s721
    %vm724 = vcmp.eq.s32.totalorder %v502, %v723
    %vm725 = vcmp.eq.s32.totalorder %v503, %v723
    %vm726 = vcmp.eq.s32.totalorder %v504, %v723
    %vm727 = vcmp.eq.s32.totalorder %v505, %v723
    %vm728 = vcmp.eq.s32.totalorder %v506, %v723
    %vm729 = vcmp.eq.s32.totalorder %v507, %v723
    %vm730 = vcmp.eq.s32.totalorder %v508, %v723
    %vm731 = vcmp.eq.s32.totalorder %v509, %v723
    %vm732 = vcmp.eq.s32.totalorder %v510, %v723
    %vm733 = vcmp.eq.s32.totalorder %v511, %v723
    %vm734 = vcmp.eq.s32.totalorder %v512, %v723
    %vm735 = vcmp.eq.s32.totalorder %v513, %v723
    %vm736 = vcmp.eq.s32.totalorder %v514, %v723
    %vm737 = vcmp.eq.s32.totalorder %v515, %v723
    %vm738 = vcmp.eq.s32.totalorder %v516, %v723
    %vm739 = vcmp.eq.s32.totalorder %v517, %v723
    %vm740 = vmand %vm722, %vm724
    %vm741 = vmand %vm722, %vm725
    %vm742 = vmand %vm722, %vm726
    %vm743 = vmand %vm722, %vm727
    %vm744 = vmand %vm722, %vm728
    %vm745 = vmand %vm722, %vm729
    %vm746 = vmand %vm722, %vm730
    %vm747 = vmand %vm722, %vm731
    %vm748 = vmand %vm722, %vm732
    %vm749 = vmand %vm722, %vm733
    %vm750 = vmand %vm722, %vm734
    %vm751 = vmand %vm722, %vm735
    %vm752 = vmand %vm722, %vm736
    %vm753 = vmand %vm722, %vm737
    %vm754 = vmand %vm722, %vm738
    %vm755 = vmand %vm722, %vm739
    %v756 = vsel %vm740, 1.0, 0.0
    %v757 = vsel %vm741, 1.0, 0.0
    %v758 = vsel %vm742, 1.0, 0.0
    %v759 = vsel %vm743, 1.0, 0.0
    %v760 = vsel %vm744, 1.0, 0.0
    %v761 = vsel %vm745, 1.0, 0.0
    %v762 = vsel %vm746, 1.0, 0.0
    %v763 = vsel %vm747, 1.0, 0.0
    %v764 = vsel %vm748, 1.0, 0.0
    %v765 = vsel %vm749, 1.0, 0.0
    %v766 = vsel %vm750, 1.0, 0.0
    %v767 = vsel %vm751, 1.0, 0.0
    %v768 = vsel %vm752, 1.0, 0.0
    %v769 = vsel %vm753, 1.0, 0.0
    %v770 = vsel %vm754, 1.0, 0.0
    %v771 = vsel %vm755, 1.0, 0.0
    %v772 = vadd.f32 %v705, %v756
    %v773 = vadd.f32 %v706, %v757
    %v774 = vadd.f32 %v707, %v758
    %v775 = vadd.f32 %v708, %v759
    %v776 = vadd.f32 %v709, %v760
    %v777 = vadd.f32 %v710, %v761
    %v778 = vadd.f32 %v711, %v762
    %v779 = vadd.f32 %v712, %v763
    %v780 = vadd.f32 %v713, %v764
    %v781 = vadd.f32 %v714, %v765
    %v782 = vadd.f32 %v715, %v766
    %v783 = vadd.f32 %v716, %v767
    %v784 = vadd.f32 %v717, %v768
    %v785 = vadd.f32 %v718, %v769
    %v786 = vadd.f32 %v719, %v770
    %v787 = vadd.f32 %v720, %v771
    %s788 = sld [smem:[#allocation3 + $0x4]]
    %vm789 = vcmp.eq.s32.totalorder %v519, 4
    %v790 = vstv %s788
    %vm791 = vcmp.eq.s32.totalorder %v502, %v790
    %vm792 = vcmp.eq.s32.totalorder %v503, %v790
    %vm793 = vcmp.eq.s32.totalorder %v504, %v790
    %vm794 = vcmp.eq.s32.totalorder %v505, %v790
    %vm795 = vcmp.eq.s32.totalorder %v506, %v790
    %vm796 = vcmp.eq.s32.totalorder %v507, %v790
    %vm797 = vcmp.eq.s32.totalorder %v508, %v790
    %vm798 = vcmp.eq.s32.totalorder %v509, %v790
    %vm799 = vcmp.eq.s32.totalorder %v510, %v790
    %vm800 = vcmp.eq.s32.totalorder %v511, %v790
    %vm801 = vcmp.eq.s32.totalorder %v512, %v790
    %vm802 = vcmp.eq.s32.totalorder %v513, %v790
    %vm803 = vcmp.eq.s32.totalorder %v514, %v790
    %vm804 = vcmp.eq.s32.totalorder %v515, %v790
    %vm805 = vcmp.eq.s32.totalorder %v516, %v790
    %vm806 = vcmp.eq.s32.totalorder %v517, %v790
    %vm807 = vmand %vm789, %vm791
    %vm808 = vmand %vm789, %vm792
    %vm809 = vmand %vm789, %vm793
    %vm810 = vmand %vm789, %vm794
    %vm811 = vmand %vm789, %vm795
    %vm812 = vmand %vm789, %vm796
    %vm813 = vmand %vm789, %vm797
    %vm814 = vmand %vm789, %vm798
    %vm815 = vmand %vm789, %vm799
    %vm816 = vmand %vm789, %vm800
    %vm817 = vmand %vm789, %vm801
    %vm818 = vmand %vm789, %vm802
    %vm819 = vmand %vm789, %vm803
    %vm820 = vmand %vm789, %vm804
    %vm821 = vmand %vm789, %vm805
    %vm822 = vmand %vm789, %vm806
    %v823 = vsel %vm807, 1.0, 0.0
    %v824 = vsel %vm808, 1.0, 0.0
    %v825 = vsel %vm809, 1.0, 0.0
    %v826 = vsel %vm810, 1.0, 0.0
    %v827 = vsel %vm811, 1.0, 0.0
    %v828 = vsel %vm812, 1.0, 0.0
    %v829 = vsel %vm813, 1.0, 0.0
    %v830 = vsel %vm814, 1.0, 0.0
    %v831 = vsel %vm815, 1.0, 0.0
    %v832 = vsel %vm816, 1.0, 0.0
    %v833 = vsel %vm817, 1.0, 0.0
    %v834 = vsel %vm818, 1.0, 0.0
    %v835 = vsel %vm819, 1.0, 0.0
    %v836 = vsel %vm820, 1.0, 0.0
    %v837 = vsel %vm821, 1.0, 0.0
    %v838 = vsel %vm822, 1.0, 0.0
    %v839 = vadd.f32 %v772, %v823
    %v840 = vadd.f32 %v773, %v824
    %v841 = vadd.f32 %v774, %v825
    %v842 = vadd.f32 %v775, %v826
    %v843 = vadd.f32 %v776, %v827
    %v844 = vadd.f32 %v777, %v828
    %v845 = vadd.f32 %v778, %v829
    %v846 = vadd.f32 %v779, %v830
    %v847 = vadd.f32 %v780, %v831
    %v848 = vadd.f32 %v781, %v832
    %v849 = vadd.f32 %v782, %v833
    %v850 = vadd.f32 %v783, %v834
    %v851 = vadd.f32 %v784, %v835
    %v852 = vadd.f32 %v785, %v836
    %v853 = vadd.f32 %v786, %v837
    %v854 = vadd.f32 %v787, %v838
    %s855 = sld [smem:[#allocation3 + $0x5]]
    %vm856 = vcmp.eq.s32.totalorder %v519, 5
    %v857 = vstv %s855
    %vm858 = vcmp.eq.s32.totalorder %v502, %v857
    %vm859 = vcmp.eq.s32.totalorder %v503, %v857
    %vm860 = vcmp.eq.s32.totalorder %v504, %v857
    %vm861 = vcmp.eq.s32.totalorder %v505, %v857
    %vm862 = vcmp.eq.s32.totalorder %v506, %v857
    %vm863 = vcmp.eq.s32.totalorder %v507, %v857
    %vm864 = vcmp.eq.s32.totalorder %v508, %v857
    %vm865 = vcmp.eq.s32.totalorder %v509, %v857
    %vm866 = vcmp.eq.s32.totalorder %v510, %v857
    %vm867 = vcmp.eq.s32.totalorder %v511, %v857
    %vm868 = vcmp.eq.s32.totalorder %v512, %v857
    %vm869 = vcmp.eq.s32.totalorder %v513, %v857
    %vm870 = vcmp.eq.s32.totalorder %v514, %v857
    %vm871 = vcmp.eq.s32.totalorder %v515, %v857
    %vm872 = vcmp.eq.s32.totalorder %v516, %v857
    %vm873 = vcmp.eq.s32.totalorder %v517, %v857
    %vm874 = vmand %vm856, %vm858
    %vm875 = vmand %vm856, %vm859
    %vm876 = vmand %vm856, %vm860
    %vm877 = vmand %vm856, %vm861
    %vm878 = vmand %vm856, %vm862
    %vm879 = vmand %vm856, %vm863
    %vm880 = vmand %vm856, %vm864
    %vm881 = vmand %vm856, %vm865
    %vm882 = vmand %vm856, %vm866
    %vm883 = vmand %vm856, %vm867
    %vm884 = vmand %vm856, %vm868
    %vm885 = vmand %vm856, %vm869
    %vm886 = vmand %vm856, %vm870
    %vm887 = vmand %vm856, %vm871
    %vm888 = vmand %vm856, %vm872
    %vm889 = vmand %vm856, %vm873
    %v890 = vsel %vm874, 1.0, 0.0
    %v891 = vsel %vm875, 1.0, 0.0
    %v892 = vsel %vm876, 1.0, 0.0
    %v893 = vsel %vm877, 1.0, 0.0
    %v894 = vsel %vm878, 1.0, 0.0
    %v895 = vsel %vm879, 1.0, 0.0
    %v896 = vsel %vm880, 1.0, 0.0
    %v897 = vsel %vm881, 1.0, 0.0
    %v898 = vsel %vm882, 1.0, 0.0
    %v899 = vsel %vm883, 1.0, 0.0
    %v900 = vsel %vm884, 1.0, 0.0
    %v901 = vsel %vm885, 1.0, 0.0
    %v902 = vsel %vm886, 1.0, 0.0
    %v903 = vsel %vm887, 1.0, 0.0
    %v904 = vsel %vm888, 1.0, 0.0
    %v905 = vsel %vm889, 1.0, 0.0
    %v906 = vadd.f32 %v839, %v890
    %v907 = vadd.f32 %v840, %v891
    %v908 = vadd.f32 %v841, %v892
    %v909 = vadd.f32 %v842, %v893
    %v910 = vadd.f32 %v843, %v894
    %v911 = vadd.f32 %v844, %v895
    %v912 = vadd.f32 %v845, %v896
    %v913 = vadd.f32 %v846, %v897
    %v914 = vadd.f32 %v847, %v898
    %v915 = vadd.f32 %v848, %v899
    %v916 = vadd.f32 %v849, %v900
    %v917 = vadd.f32 %v850, %v901
    %v918 = vadd.f32 %v851, %v902
    %v919 = vadd.f32 %v852, %v903
    %v920 = vadd.f32 %v853, %v904
    %v921 = vadd.f32 %v854, %v905
    %vm922 = vcmask 64512
    %v923 = vsel %vm922, %v906, 0.0
    %924 = vadd.xlane.f32.xlu0 %v923
    %v925 = vpop.xlane.xlu0 %924
    %v926 = vsel %vm922, %v907, 0.0
    %927 = vadd.xlane.f32.xlu0 %v926
    %v928 = vpop.xlane.xlu0 %927
    %v929 = vsel %vm922, %v908, 0.0
    %930 = vadd.xlane.f32.xlu0 %v929
    %v931 = vpop.xlane.xlu0 %930
    %v932 = vsel %vm922, %v909, 0.0
    %933 = vadd.xlane.f32.xlu0 %v932
    %v934 = vpop.xlane.xlu0 %933
    %v935 = vsel %vm922, %v910, 0.0
    %936 = vadd.xlane.f32.xlu0 %v935
    %v937 = vpop.xlane.xlu0 %936
    %v938 = vsel %vm922, %v911, 0.0
    %939 = vadd.xlane.f32.xlu0 %v938
    %v940 = vpop.xlane.xlu0 %939
    %v941 = vsel %vm922, %v912, 0.0
    %942 = vadd.xlane.f32.xlu0 %v941
    %v943 = vpop.xlane.xlu0 %942
    %v944 = vsel %vm922, %v913, 0.0
    %945 = vadd.xlane.f32.xlu0 %v944
    %v946 = vpop.xlane.xlu0 %945
    %v947 = vsel %vm922, %v914, 0.0
    %948 = vadd.xlane.f32.xlu0 %v947
    %v949 = vpop.xlane.xlu0 %948
    %v950 = vsel %vm922, %v915, 0.0
    %951 = vadd.xlane.f32.xlu0 %v950
    %v952 = vpop.xlane.xlu0 %951
    %v953 = vsel %vm922, %v916, 0.0
    %954 = vadd.xlane.f32.xlu0 %v953
    %v955 = vpop.xlane.xlu0 %954
    %v956 = vsel %vm922, %v917, 0.0
    %957 = vadd.xlane.f32.xlu0 %v956
    %v958 = vpop.xlane.xlu0 %957
    %v959 = vsel %vm922, %v918, 0.0
    %960 = vadd.xlane.f32.xlu0 %v959
    %v961 = vpop.xlane.xlu0 %960
    %v962 = vsel %vm922, %v919, 0.0
    %963 = vadd.xlane.f32.xlu0 %v962
    %v964 = vpop.xlane.xlu0 %963
    %v965 = vsel %vm922, %v920, 0.0
    %966 = vadd.xlane.f32.xlu0 %v965
    %v967 = vpop.xlane.xlu0 %966
    %v968 = vsel %vm922, %v921, 0.0
    %969 = vadd.xlane.f32.xlu0 %v968
    %v970 = vpop.xlane.xlu0 %969
    %vm971 = vcmp.gt.f32.partialorder %v925, 0.0
    %vm972 = vcmp.gt.f32.partialorder %v928, 0.0
    %vm973 = vcmp.gt.f32.partialorder %v931, 0.0
    %vm974 = vcmp.gt.f32.partialorder %v934, 0.0
    %vm975 = vcmp.gt.f32.partialorder %v937, 0.0
    %vm976 = vcmp.gt.f32.partialorder %v940, 0.0
    %vm977 = vcmp.gt.f32.partialorder %v943, 0.0
    %vm978 = vcmp.gt.f32.partialorder %v946, 0.0
    %vm979 = vcmp.gt.f32.partialorder %v949, 0.0
    %vm980 = vcmp.gt.f32.partialorder %v952, 0.0
    %vm981 = vcmp.gt.f32.partialorder %v955, 0.0
    %vm982 = vcmp.gt.f32.partialorder %v958, 0.0
    %vm983 = vcmp.gt.f32.partialorder %v961, 0.0
    %vm984 = vcmp.gt.f32.partialorder %v964, 0.0
    %vm985 = vcmp.gt.f32.partialorder %v967, 0.0
    %vm986 = vcmp.gt.f32.partialorder %v970, 0.0
    %v987 = vmax.f32 %v925, 1.0
    %v988 = vmax.f32 %v928, 1.0
    %v989 = vmax.f32 %v931, 1.0
    %v990 = vmax.f32 %v934, 1.0
    %v991 = vmax.f32 %v937, 1.0
    %v992 = vmax.f32 %v940, 1.0
    %v993 = vmax.f32 %v943, 1.0
    %v994 = vmax.f32 %v946, 1.0
    %v995 = vmax.f32 %v949, 1.0
    %v996 = vmax.f32 %v952, 1.0
    %v997 = vmax.f32 %v955, 1.0
    %v998 = vmax.f32 %v958, 1.0
    %v999 = vmax.f32 %v961, 1.0
    %v1000 = vmax.f32 %v964, 1.0
    %v1001 = vmax.f32 %v967, 1.0
    %v1002 = vmax.f32 %v970, 1.0
    %v1003 = vrcp.pop %v987
    %v1004 = vmul.f32 1.0, %v1003
    %v1005 = vrcp.pop %v988
    %v1006 = vmul.f32 1.0, %v1005
    %v1007 = vrcp.pop %v989
    %v1008 = vmul.f32 1.0, %v1007
    %v1009 = vrcp.pop %v990
    %v1010 = vmul.f32 1.0, %v1009
    %v1011 = vrcp.pop %v991
    %v1012 = vmul.f32 1.0, %v1011
    %v1013 = vrcp.pop %v992
    %v1014 = vmul.f32 1.0, %v1013
    %v1015 = vrcp.pop %v993
    %v1016 = vmul.f32 1.0, %v1015
    %v1017 = vrcp.pop %v994
    %v1018 = vmul.f32 1.0, %v1017
    %v1019 = vrcp.pop %v995
    %v1020 = vmul.f32 1.0, %v1019
    %v1021 = vrcp.pop %v996
    %v1022 = vmul.f32 1.0, %v1021
    %v1023 = vrcp.pop %v997
    %v1024 = vmul.f32 1.0, %v1023
    %v1025 = vrcp.pop %v998
    %v1026 = vmul.f32 1.0, %v1025
    %v1027 = vrcp.pop %v999
    %v1028 = vmul.f32 1.0, %v1027
    %v1029 = vrcp.pop %v1000
    %v1030 = vmul.f32 1.0, %v1029
    %v1031 = vrcp.pop %v1001
    %v1032 = vmul.f32 1.0, %v1031
    %v1033 = vrcp.pop %v1002
    %v1034 = vmul.f32 1.0, %v1033
    %v1035 = vsel %vm971, %v1004, 0.0
    %v1036 = vsel %vm972, %v1006, 0.0
    %v1037 = vsel %vm973, %v1008, 0.0
    %v1038 = vsel %vm974, %v1010, 0.0
    %v1039 = vsel %vm975, %v1012, 0.0
    %v1040 = vsel %vm976, %v1014, 0.0
    %v1041 = vsel %vm977, %v1016, 0.0
    %v1042 = vsel %vm978, %v1018, 0.0
    %v1043 = vsel %vm979, %v1020, 0.0
    %v1044 = vsel %vm980, %v1022, 0.0
    %v1045 = vsel %vm981, %v1024, 0.0
    %v1046 = vsel %vm982, %v1026, 0.0
    %v1047 = vsel %vm983, %v1028, 0.0
    %v1048 = vsel %vm984, %v1030, 0.0
    %v1049 = vsel %vm985, %v1032, 0.0
    %v1050 = vsel %vm986, %v1034, 0.0
    %v1051 = vmul.f32 %v906, %v1035
    %v1052 = vmul.f32 %v907, %v1036
    %v1053 = vmul.f32 %v908, %v1037
    %v1054 = vmul.f32 %v909, %v1038
    %v1055 = vmul.f32 %v910, %v1039
    %v1056 = vmul.f32 %v911, %v1040
    %v1057 = vmul.f32 %v912, %v1041
    %v1058 = vmul.f32 %v913, %v1042
    %v1059 = vmul.f32 %v914, %v1043
    %v1060 = vmul.f32 %v915, %v1044
    %v1061 = vmul.f32 %v916, %v1045
    %v1062 = vmul.f32 %v917, %v1046
    %v1063 = vmul.f32 %v918, %v1047
    %v1064 = vmul.f32 %v919, %v1048
    %v1065 = vmul.f32 %v920, %v1049
    %v1066 = vmul.f32 %v921, %v1050
    %v1068 = vsel %vm922, %v1051, 0
    %v1071 = vsel %vm922, %v1052, 0
    %v1074 = vsel %vm922, %v1053, 0
    %v1077 = vsel %vm922, %v1054, 0
    %v1080 = vsel %vm922, %v1055, 0
    %v1083 = vsel %vm922, %v1056, 0
    %v1086 = vsel %vm922, %v1057, 0
    %v1089 = vsel %vm922, %v1058, 0
    %v1092 = vsel %vm922, %v1059, 0
    %v1095 = vsel %vm922, %v1060, 0
    %v1098 = vsel %vm922, %v1061, 0
    %v1101 = vsel %vm922, %v1062, 0
    %v1104 = vsel %vm922, %v1063, 0
    %v1107 = vsel %vm922, %v1064, 0
    %v1110 = vsel %vm922, %v1065, 0
    %v1113 = vsel %vm922, %v1066, 0
    %1115 = vmatprep.subr.mxu0 0.0
    %1116 = vmatpush1.msra.mxu0 0.0
    %1117 = vmatprep.subr.mxu0 0.0
    %1118 = vmatpush1.msra.mxu0 0.0
    %1119 = vmatprep.subr.mxu0 0.0
    %1120 = vmatpush1.msra.mxu0 0.0
    %1121 = vmatprep.subr.mxu0 0.0
    %1122 = vmatpush1.msra.mxu0 0.0
    %1123 = vmatprep.subr.mxu0 0.0
    %1124 = vmatpush1.msra.mxu0 0.0
    %1125 = vmatprep.subr.mxu0 0.0
    %1126 = vmatpush1.msra.mxu0 0.0
    %1127 = vmatprep.subr.mxu0 0.0
    %1128 = vmatpush1.msra.mxu0 0.0
    %1129 = vmatprep.subr.mxu0 0.0
    %1130 = vmatpush1.msra.mxu0 0.0
    %1131 = vmatprep.subr.mxu0 0.0
    %1132 = vmatpush1.msra.mxu0 0.0
    %1133 = vmatprep.subr.mxu0 0.0
    %1134 = vmatpush1.msra.mxu0 0.0
    %1135 = vmatprep.subr.mxu0 0.0
    %1136 = vmatpush1.msra.mxu0 0.0
    %1137 = vmatprep.subr.mxu0 0.0
    %1138 = vmatpush1.msra.mxu0 0.0
    %1139 = vmatprep.subr.mxu0 0.0
    %1140 = vmatpush1.msra.mxu0 0.0
    %1141 = vmatprep.subr.mxu0 0.0
    %1142 = vmatpush1.msra.mxu0 0.0
    %1143 = vmatprep.subr.mxu0 0.0
    %1144 = vmatpush1.msra.mxu0 0.0
    %1145 = vmatprep.subr.mxu0 0.0
    %1146 = vmatpush1.msra.mxu0 %v499
    %1147 = vmatprep.subr.mxu0 0.0
    %1148 = vmatpush2.msra.mxu0 0.0
    %1149 = vmatprep.subr.mxu0 0.0
    %1150 = vmatpush2.msra.mxu0 0.0
    %1151 = vmatprep.subr.mxu0 0.0
    %1152 = vmatpush2.msra.mxu0 0.0
    %1153 = vmatprep.subr.mxu0 0.0
    %1154 = vmatpush2.msra.mxu0 0.0
    %1155 = vmatprep.subr.mxu0 0.0
    %1156 = vmatpush2.msra.mxu0 0.0
    %1157 = vmatprep.subr.mxu0 0.0
    %1158 = vmatpush2.msra.mxu0 0.0
    %1159 = vmatprep.subr.mxu0 0.0
    %1160 = vmatpush2.msra.mxu0 0.0
    %1161 = vmatprep.subr.mxu0 0.0
    %1162 = vmatpush2.msra.mxu0 0.0
    %1163 = vmatprep.subr.mxu0 0.0
    %1164 = vmatpush2.msra.mxu0 0.0
    %1165 = vmatprep.subr.mxu0 0.0
    %1166 = vmatpush2.msra.mxu0 0.0
    %1167 = vmatprep.subr.mxu0 0.0
    %1168 = vmatpush2.msra.mxu0 0.0
    %1169 = vmatprep.subr.mxu0 0.0
    %1170 = vmatpush2.msra.mxu0 0.0
    %1171 = vmatprep.subr.mxu0 0.0
    %1172 = vmatpush2.msra.mxu0 0.0
    %1173 = vmatprep.subr.mxu0 0.0
    %1174 = vmatpush2.msra.mxu0 0.0
    %1175 = vmatprep.subr.mxu0 0.0
    %1176 = vmatpush2.msra.mxu0 0.0
    %1177 = vmatprep.subr.mxu0 0.0
    %1178 = vmatpush2.msra.mxu0 0.0
    %1179 = vmatprep.mubr.f32.mxu0 0.0
    %1180 = vmatmul.mubr.f32.gmra.mxu0 %v1068
    %v1181 = vpop.f32.mrf.mxu0
    %v1182 = vadd.f32 0.0, %v1181
    %v1183 = vpop.f32.mrf.mxu0
    %1184 = vmatprep.mubr.f32.mxu0 0.0
    %1185 = vmatmul.mubr.f32.gmra.mxu0 %v1071
    %v1186 = vpop.f32.mrf.mxu0
    %v1187 = vadd.f32 0.0, %v1186
    %v1188 = vpop.f32.mrf.mxu0
    %1189 = vmatprep.mubr.f32.mxu0 0.0
    %1190 = vmatmul.mubr.f32.gmra.mxu0 %v1074
    %v1191 = vpop.f32.mrf.mxu0
    %v1192 = vadd.f32 0.0, %v1191
    %v1193 = vpop.f32.mrf.mxu0
    %1194 = vmatprep.mubr.f32.mxu0 0.0
    %1195 = vmatmul.mubr.f32.gmra.mxu0 %v1077
    %v1196 = vpop.f32.mrf.mxu0
    %v1197 = vadd.f32 0.0, %v1196
    %v1198 = vpop.f32.mrf.mxu0
    %1199 = vmatprep.mubr.f32.mxu0 0.0
    %1200 = vmatmul.mubr.f32.gmra.mxu0 %v1080
    %v1201 = vpop.f32.mrf.mxu0
    %v1202 = vadd.f32 0.0, %v1201
    %v1203 = vpop.f32.mrf.mxu0
    %1204 = vmatprep.mubr.f32.mxu0 0.0
    %1205 = vmatmul.mubr.f32.gmra.mxu0 %v1083
    %v1206 = vpop.f32.mrf.mxu0
    %v1207 = vadd.f32 0.0, %v1206
    %v1208 = vpop.f32.mrf.mxu0
    %1209 = vmatprep.mubr.f32.mxu0 0.0
    %1210 = vmatmul.mubr.f32.gmra.mxu0 %v1086
    %v1211 = vpop.f32.mrf.mxu0
    %v1212 = vadd.f32 0.0, %v1211
    %v1213 = vpop.f32.mrf.mxu0
    %1214 = vmatprep.mubr.f32.mxu0 0.0
    %1215 = vmatmul.mubr.f32.gmra.mxu0 %v1089
    %v1216 = vpop.f32.mrf.mxu0
    %v1217 = vadd.f32 0.0, %v1216
    %v1218 = vpop.f32.mrf.mxu0
    %1219 = vmatprep.mubr.f32.mxu0 0.0
    %1220 = vmatmul.mubr.f32.gmra.mxu0 %v1092
    %v1221 = vpop.f32.mrf.mxu0
    %v1222 = vadd.f32 0.0, %v1221
    %v1223 = vpop.f32.mrf.mxu0
    %1224 = vmatprep.mubr.f32.mxu0 0.0
    %1225 = vmatmul.mubr.f32.gmra.mxu0 %v1095
    %v1226 = vpop.f32.mrf.mxu0
    %v1227 = vadd.f32 0.0, %v1226
    %v1228 = vpop.f32.mrf.mxu0
    %1229 = vmatprep.mubr.f32.mxu0 0.0
    %1230 = vmatmul.mubr.f32.gmra.mxu0 %v1098
    %v1231 = vpop.f32.mrf.mxu0
    %v1232 = vadd.f32 0.0, %v1231
    %v1233 = vpop.f32.mrf.mxu0
    %1234 = vmatprep.mubr.f32.mxu0 0.0
    %1235 = vmatmul.mubr.f32.gmra.mxu0 %v1101
    %v1236 = vpop.f32.mrf.mxu0
    %v1237 = vadd.f32 0.0, %v1236
    %v1238 = vpop.f32.mrf.mxu0
    %1239 = vmatprep.mubr.f32.mxu0 0.0
    %1240 = vmatmul.mubr.f32.gmra.mxu0 %v1104
    %v1241 = vpop.f32.mrf.mxu0
    %v1242 = vadd.f32 0.0, %v1241
    %v1243 = vpop.f32.mrf.mxu0
    %1244 = vmatprep.mubr.f32.mxu0 0.0
    %1245 = vmatmul.mubr.f32.gmra.mxu0 %v1107
    %v1246 = vpop.f32.mrf.mxu0
    %v1247 = vadd.f32 0.0, %v1246
    %v1248 = vpop.f32.mrf.mxu0
    %1249 = vmatprep.mubr.f32.mxu0 0.0
    %1250 = vmatmul.mubr.f32.gmra.mxu0 %v1110
    %v1251 = vpop.f32.mrf.mxu0
    %v1252 = vadd.f32 0.0, %v1251
    %v1253 = vpop.f32.mrf.mxu0
    %1254 = vmatprep.mubr.f32.mxu0 0.0
    %1255 = vmatmul.mubr.f32.gmra.mxu0 %v1113
    %v1256 = vpop.f32.mrf.mxu0
    %v1257 = vadd.f32 0.0, %v1256
    %v1258 = vpop.f32.mrf.mxu0
    %1259 = vdwg.mxu0
    %1260 = vmatprep.subr.mxu0 0.0
    %1261 = vmatpush1.xpose.msra.mxu0 %v1257
    %1262 = vmatprep.subr.mxu0 0.0
    %1263 = vmatpush1.xpose.msra.mxu0 %v1252
    %1264 = vmatprep.subr.mxu0 0.0
    %1265 = vmatpush1.xpose.msra.mxu0 %v1247
    %1266 = vmatprep.subr.mxu0 0.0
    %1267 = vmatpush1.xpose.msra.mxu0 %v1242
    %1268 = vmatprep.subr.mxu0 0.0
    %1269 = vmatpush1.xpose.msra.mxu0 %v1237
    %1270 = vmatprep.subr.mxu0 0.0
    %1271 = vmatpush1.xpose.msra.mxu0 %v1232
    %1272 = vmatprep.subr.mxu0 0.0
    %1273 = vmatpush1.xpose.msra.mxu0 %v1227
    %1274 = vmatprep.subr.mxu0 0.0
    %1275 = vmatpush1.xpose.msra.mxu0 %v1222
    %1276 = vmatprep.subr.mxu0 0.0
    %1277 = vmatpush1.xpose.msra.mxu0 %v1217
    %1278 = vmatprep.subr.mxu0 0.0
    %1279 = vmatpush1.xpose.msra.mxu0 %v1212
    %1280 = vmatprep.subr.mxu0 0.0
    %1281 = vmatpush1.xpose.msra.mxu0 %v1207
    %1282 = vmatprep.subr.mxu0 0.0
    %1283 = vmatpush1.xpose.msra.mxu0 %v1202
    %1284 = vmatprep.subr.mxu0 0.0
    %1285 = vmatpush1.xpose.msra.mxu0 %v1197
    %1286 = vmatprep.subr.mxu0 0.0
    %1287 = vmatpush1.xpose.msra.mxu0 %v1192
    %1288 = vmatprep.subr.mxu0 0.0
    %1289 = vmatpush1.xpose.msra.mxu0 %v1187
    %1290 = vmatprep.subr.mxu0 0.0
    %1291 = vmatpush1.xpose.msra.mxu0 %v1182
    %1292 = vmatprep.subr.mxu0 0.0
    %1293 = vmatpush2.xpose.msra.mxu0 0.0
    %1294 = vmatprep.subr.mxu0 0.0
    %1295 = vmatpush2.xpose.msra.mxu0 0.0
    %1296 = vmatprep.subr.mxu0 0.0
    %1297 = vmatpush2.xpose.msra.mxu0 0.0
    %1298 = vmatprep.subr.mxu0 0.0
    %1299 = vmatpush2.xpose.msra.mxu0 0.0
    %1300 = vmatprep.subr.mxu0 0.0
    %1301 = vmatpush2.xpose.msra.mxu0 0.0
    %1302 = vmatprep.subr.mxu0 0.0
    %1303 = vmatpush2.xpose.msra.mxu0 0.0
    %1304 = vmatprep.subr.mxu0 0.0
    %1305 = vmatpush2.xpose.msra.mxu0 0.0
    %1306 = vmatprep.subr.mxu0 0.0
    %1307 = vmatpush2.xpose.msra.mxu0 0.0
    %1308 = vmatprep.subr.mxu0 0.0
    %1309 = vmatpush2.xpose.msra.mxu0 0.0
    %1310 = vmatprep.subr.mxu0 0.0
    %1311 = vmatpush2.xpose.msra.mxu0 0.0
    %1312 = vmatprep.subr.mxu0 0.0
    %1313 = vmatpush2.xpose.msra.mxu0 0.0
    %1314 = vmatprep.subr.mxu0 0.0
    %1315 = vmatpush2.xpose.msra.mxu0 0.0
    %1316 = vmatprep.subr.mxu0 0.0
    %1317 = vmatpush2.xpose.msra.mxu0 0.0
    %1318 = vmatprep.subr.mxu0 0.0
    %1319 = vmatpush2.xpose.msra.mxu0 0.0
    %1320 = vmatprep.subr.mxu0 0.0
    %1321 = vmatpush2.xpose.msra.mxu0 0.0
    %1322 = vmatprep.subr.mxu0 0.0
    %1323 = vmatpush2.xpose.msra.mxu0 0.0
    %1324 = vmatprep.mubr.f32.mxu0 0.0
    %1325 = vmatmul.mubr.f32.gmra.mxu0 %v500
    %v1326 = vpop.f32.mrf.mxu0
    %v1327 = vadd.f32 0.0, %v1326
    %v1328 = vpop.f32.mrf.mxu0
    %1329 = vdwg.mxu0
    %v1330 = vmul.f32 %v500, %v500
    %1331 = vadd.xlane.f32.xlu0 %v1330
    %v1332 = vpop.xlane.xlu0 %1331
    %v1333 = vmul.f32 %v1182, %v1182
    %v1334 = vmul.f32 %v1187, %v1187
    %v1335 = vmul.f32 %v1192, %v1192
    %v1336 = vmul.f32 %v1197, %v1197
    %v1337 = vmul.f32 %v1202, %v1202
    %v1338 = vmul.f32 %v1207, %v1207
    %v1339 = vmul.f32 %v1212, %v1212
    %v1340 = vmul.f32 %v1217, %v1217
    %v1341 = vmul.f32 %v1222, %v1222
    %v1342 = vmul.f32 %v1227, %v1227
    %v1343 = vmul.f32 %v1232, %v1232
    %v1344 = vmul.f32 %v1237, %v1237
    %v1345 = vmul.f32 %v1242, %v1242
    %v1346 = vmul.f32 %v1247, %v1247
    %v1347 = vmul.f32 %v1252, %v1252
    %v1348 = vmul.f32 %v1257, %v1257
    %1349 = vmatprep.subr.mxu0 0.0
    %1350 = vmatpush1.xpose.msra.mxu0 %v1348
    %1351 = vmatprep.subr.mxu0 0.0
    %1352 = vmatpush1.xpose.msra.mxu0 %v1347
    %1353 = vmatprep.subr.mxu0 0.0
    %1354 = vmatpush1.xpose.msra.mxu0 %v1346
    %1355 = vmatprep.subr.mxu0 0.0
    %1356 = vmatpush1.xpose.msra.mxu0 %v1345
    %1357 = vmatprep.subr.mxu0 0.0
    %1358 = vmatpush1.xpose.msra.mxu0 %v1344
    %1359 = vmatprep.subr.mxu0 0.0
    %1360 = vmatpush1.xpose.msra.mxu0 %v1343
    %1361 = vmatprep.subr.mxu0 0.0
    %1362 = vmatpush1.xpose.msra.mxu0 %v1342
    %1363 = vmatprep.subr.mxu0 0.0
    %1364 = vmatpush1.xpose.msra.mxu0 %v1341
    %1365 = vmatprep.subr.mxu0 0.0
    %1366 = vmatpush1.xpose.msra.mxu0 %v1340
    %1367 = vmatprep.subr.mxu0 0.0
    %1368 = vmatpush1.xpose.msra.mxu0 %v1339
    %1369 = vmatprep.subr.mxu0 0.0
    %1370 = vmatpush1.xpose.msra.mxu0 %v1338
    %1371 = vmatprep.subr.mxu0 0.0
    %1372 = vmatpush1.xpose.msra.mxu0 %v1337
    %1373 = vmatprep.subr.mxu0 0.0
    %1374 = vmatpush1.xpose.msra.mxu0 %v1336
    %1375 = vmatprep.subr.mxu0 0.0
    %1376 = vmatpush1.xpose.msra.mxu0 %v1335
    %1377 = vmatprep.subr.mxu0 0.0
    %1378 = vmatpush1.xpose.msra.mxu0 %v1334
    %1379 = vmatprep.subr.mxu0 0.0
    %1380 = vmatpush1.xpose.msra.mxu0 %v1333
    %1381 = vmatprep.subr.mxu0 0.0
    %1382 = vmatpush2.xpose.msra.mxu0 0.0
    %1383 = vmatprep.subr.mxu0 0.0
    %1384 = vmatpush2.xpose.msra.mxu0 0.0
    %1385 = vmatprep.subr.mxu0 0.0
    %1386 = vmatpush2.xpose.msra.mxu0 0.0
    %1387 = vmatprep.subr.mxu0 0.0
    %1388 = vmatpush2.xpose.msra.mxu0 0.0
    %1389 = vmatprep.subr.mxu0 0.0
    %1390 = vmatpush2.xpose.msra.mxu0 0.0
    %1391 = vmatprep.subr.mxu0 0.0
    %1392 = vmatpush2.xpose.msra.mxu0 0.0
    %1393 = vmatprep.subr.mxu0 0.0
    %1394 = vmatpush2.xpose.msra.mxu0 0.0
    %1395 = vmatprep.subr.mxu0 0.0
    %1396 = vmatpush2.xpose.msra.mxu0 0.0
    %1397 = vmatprep.subr.mxu0 0.0
    %1398 = vmatpush2.xpose.msra.mxu0 0.0
    %1399 = vmatprep.subr.mxu0 0.0
    %1400 = vmatpush2.xpose.msra.mxu0 0.0
    %1401 = vmatprep.subr.mxu0 0.0
    %1402 = vmatpush2.xpose.msra.mxu0 0.0
    %1403 = vmatprep.subr.mxu0 0.0
    %1404 = vmatpush2.xpose.msra.mxu0 0.0
    %1405 = vmatprep.subr.mxu0 0.0
    %1406 = vmatpush2.xpose.msra.mxu0 0.0
    %1407 = vmatprep.subr.mxu0 0.0
    %1408 = vmatpush2.xpose.msra.mxu0 0.0
    %1409 = vmatprep.subr.mxu0 0.0
    %1410 = vmatpush2.xpose.msra.mxu0 0.0
    %1411 = vmatprep.subr.mxu0 0.0
    %1412 = vmatpush2.xpose.msra.mxu0 0.0
    %1413 = vmatprep.mubr.f32.mxu0 0.0
    %1414 = vmatmul.mubr.f32.gmra.mxu0 1.0
    %v1415 = vpop.f32.mrf.mxu0
    %v1416 = vadd.f32 0.0, %v1415
    %v1417 = vpop.f32.mrf.mxu0
    %1418 = vdwg.mxu0
    %v1419 = vlaneseq
    %v1420 = vshrl.u32 %v1419, 7
    %v1421 = vsub.s32 0, %v1420
    %v1422 = vrot.slane %v1416, %v1421
    %v1423 = vadd.f32 %v1332, %v1422
    %v1424 = vmul.f32 %v1327, 2.0
    %v1425 = vsub.f32 %v1423, %v1424
    %v1426 = vmax.f32 %v1425, 0.0
    %v1427 = vrsqrt.pop %v1426
    %v1428 = vmul.f32 %v1426, %v1427
    %vm1429 = vcmp.eq.f32.partialorder %v1426, inf
    %v1430 = vsel %vm1429, %v1426, %v1428
    %vm1431 = vcmp.eq.f32.partialorder %v1426, 0.0
    %v1432 = vand.u32 %v1426, 2147483648
    %v1433 = vsel %vm1431, %v1432, %v1430
    %v1434 = vsub.f32 0.0, %v1433
    %1435 = vst [vmem:[#allocation9] sm:$0xff] %v1434
    // Predicated region
    $region22: #{tpu_custom_call.1} parent=1 // pred_check
      _
    $region23: #{tpu_custom_call.1} parent=1 // pred_check_branch
      %1437 = sbr.rel (0) target = $region25
    $region24: #{tpu_custom_call.1} parent=1 // pred_region
      %s1439 = ssub.s32 128, 128
      %1440 = vsyncadd [#allocation6], %s1439
      %s1442 = sshll.u32 [#allocation9], 4
      %s1443 = int_to_ptr.vmem [resolvable:$true] %s1442
      %1445 = dma.vmem_to_hbm [thread:$0]  %s1443, 128, %s4, [#allocation6]
    $region25: #{tpu_custom_call.1} parent=1 // pred_fallthru
      _
    // Predicated region
    $region26: #{tpu_custom_call.1} parent=1 // pred_check
      _
    $region27: #{tpu_custom_call.1} parent=1 // pred_check_branch
      %1447 = sbr.rel (0) target = $region29
    $region28: #{tpu_custom_call.1} parent=1 // pred_region
      %1448 = dma.done [#allocation6], 128
    $region29: #{tpu_custom_call.1} parent=1 // pred_fallthru
      _
    %1449 = vsyncpa [#allocation5], 1
    %1450 = vsyncpa [#allocation8], 1
    %1451 = vsyncpa [#allocation6], 1

</llo_original>
